<compile_context>
chip_gen: v5e
topology: v5e:2x2
jax: 0.10.0
libtpu: 0.0.40
codegen_flags: <defaults>
</compile_context>

<pallas_src>
import functools

import numpy as np
import jax
import jax.numpy as jnp
from jax.experimental import pallas as pl
from jax.experimental.pallas import tpu as pltpu

_LANES = 128


def _dice_partial_kernel(x_ref, t_ref, inter_ref, z_ref, y_ref, *,
                         n_classes, th, n_inner, hw, use_softmax, has_pad):
    """Accumulates per-class lane-wise intersect / z_sum / y_sum partials.

    x_ref:  (C, th, 128)  logits / probabilities (native dtype, cast here)
    t_ref:  (th, 128)     integer labels (padded positions hold n_classes)
    *_ref:  (C, 128)      f32 accumulators, resident across the reduction axis
    """
    i = pl.program_id(2)  # inner row-tile index (reduction axis)

    @pl.when(i == 0)
    def _():
        inter_ref[...] = jnp.zeros_like(inter_ref)
        z_ref[...] = jnp.zeros_like(z_ref)
        y_ref[...] = jnp.zeros_like(y_ref)

    x = x_ref[...].astype(jnp.float32)                     # (C, th, 128)
    if use_softmax:
        m = jnp.max(x, axis=0, keepdims=True)              # elementwise over C slabs
        e = jnp.exp(x - m)
        d = jnp.sum(e, axis=0, keepdims=True)
        r = pl.reciprocal(d, approx=True)                  # EUP slot
        r = r * (2.0 - d * r)                              # one Newton step -> ~exact
        score = e * r
    else:
        score = x

    tgt = t_ref[...].astype(jnp.int32)                     # (th, 128)

    def accumulate(sc_all):
        # Per-class: sublane reduce (th,128) -> (1,128), lane-dense accumulate.
        for c in range(n_classes):
            sc = sc_all[c]                                  # (th, 128)
            mc = tgt == c
            inter_ref[pl.ds(c, 1), :] += jnp.sum(
                jnp.where(mc, sc, 0.0), axis=0, keepdims=True)
            z_ref[pl.ds(c, 1), :] += jnp.sum(sc * sc, axis=0, keepdims=True)
            y_ref[pl.ds(c, 1), :] += jnp.sum(
                mc.astype(jnp.float32), axis=0, keepdims=True)

    if has_pad:
        # Only tiles overlapping the padded tail pay for the validity mask.
        row_blk = pl.program_id(1) * n_inner + i
        tile_cols = th * _LANES
        tile_end = (row_blk + 1) * tile_cols
        is_tail = tile_end > hw

        @pl.when(is_tail)
        def _():
            base = row_blk * tile_cols
            flat = (base
                    + jax.lax.broadcasted_iota(jnp.int32, (th, _LANES), 0) * _LANES
                    + jax.lax.broadcasted_iota(jnp.int32, (th, _LANES), 1))
            valid = flat < hw                               # (th, 128)
            accumulate(jnp.where(valid[None, :, :], score, 0.0))

        @pl.when(tile_end <= hw)
        def _():
            accumulate(score)
    else:
        accumulate(score)


def _round_up(v, m):
    return ((v + m - 1) // m) * m


def _sublane_align(dtype):
    # Rows needed for a dense sublane tile: 8 (32-bit), 16 (16-bit), 32 (8-bit).
    return 8 * max(1, 4 // jnp.dtype(dtype).itemsize)


def dice_loss_pallas(inputs, target, n_classes, weight=None, softmax=False,
                     tile_rows=512):
    """Pallas implementation of DiceLoss.forward.

    inputs: (B, C, H, W) logits (softmax=True) or probabilities, any float dtype.
    target: (B, H, W) integer class labels (any integer dtype).
    """
    B, C, H, W = inputs.shape
    assert C == n_classes
    HW = H * W

    n_rows = -(-HW // _LANES)
    row_align = max(_sublane_align(inputs.dtype), _sublane_align(target.dtype))

    # Padding-aware VMEM budget for the double-buffered input blocks.
    per_row_bytes = 2 * _LANES * (C * inputs.dtype.itemsize + target.dtype.itemsize)
    budget_bytes = 12 * 1024 * 1024
    th_cap = max(row_align, (budget_bytes // per_row_bytes) // row_align * row_align)
    th_target = max(row_align, min(_round_up(int(tile_rows), row_align), th_cap))

    n_blk = -(-n_rows // th_target)
    # Second parallel axis over rows so both v7x TensorCores stay busy at B==1 / odd B.
    want_outer = (B % 2 != 0) and (n_rows >= 2 * row_align)
    if want_outer and n_blk < 2:
        n_blk = 2
    n_outer = 2 if (want_outer and n_blk >= 2) else 1
    n_blk = _round_up(n_blk, n_outer)
    th = _round_up(-(-n_rows // n_blk), row_align)          # <= th_target <= th_cap
    n_inner = n_blk // n_outer
    n_rows_pad = n_blk * th
    HW_pad = n_rows_pad * _LANES
    has_pad = HW_pad != HW

    # One-time reshape (+ pad to a lane/tile multiple when needed).
    x = inputs.reshape(B, C, HW)
    t = target.reshape(B, HW)
    if has_pad:
        pad = HW_pad - HW
        x = jnp.pad(x, ((0, 0), (0, 0), (0, pad)))
        # Pad labels with n_classes so they can never match a real class.
        t = jnp.pad(t, ((0, 0), (0, pad)), constant_values=n_classes)
    x = x.reshape(B, C, n_rows_pad, _LANES)
    t = t.reshape(B, n_rows_pad, _LANES)

    kernel = functools.partial(
        _dice_partial_kernel,
        n_classes=n_classes, th=th, n_inner=n_inner, hw=HW,
        use_softmax=bool(softmax), has_pad=has_pad)

    out_sds = jax.ShapeDtypeStruct((B, n_outer, C, _LANES), jnp.float32)
    out_spec = pl.BlockSpec((pl.Squeezed(), pl.Squeezed(), C, _LANES),
                            lambda b, o, i: (b, o, 0, 0))

    inter_p, z_p, y_p = pl.pallas_call(
        kernel,
        out_shape=(out_sds, out_sds, out_sds),
        grid_spec=pltpu.PrefetchScalarGridSpec(
            num_scalar_prefetch=0,
            grid=(B, n_outer, n_inner),
            in_specs=[
                pl.BlockSpec((pl.Squeezed(), C, th, _LANES),
                             lambda b, o, i: (b, 0, o * n_inner + i, 0)),
                pl.BlockSpec((pl.Squeezed(), th, _LANES),
                             lambda b, o, i: (b, o * n_inner + i, 0)),
            ],
            out_specs=(out_spec, out_spec, out_spec),
        ),
        compiler_params=pltpu.CompilerParams(
            dimension_semantics=("parallel", "parallel", "arbitrary"),
            vmem_limit_bytes=32 * 1024 * 1024),
    )(x, t)

    # Tiny epilogue in plain JAX: combine lane/batch/outer partial sums.
    intersect = jnp.sum(inter_p, axis=(0, 1, 3))            # (C,)
    z_sum = jnp.sum(z_p, axis=(0, 1, 3))                    # (C,)
    y_sum = jnp.sum(y_p, axis=(0, 1, 3))                    # (C,)

    if weight is None:
        weight = [1.0] * n_classes
    w = jnp.asarray(weight, jnp.float32)

    smooth = 1e-5
    dice = 1.0 - (2.0 * intersect + smooth) / (z_sum + y_sum + smooth)
    return jnp.sum(dice * w) / n_classes


def dice_loss_reference(inputs, target, n_classes, weight=None, softmax=False):
    """Pure-JAX re-implementation of the PyTorch module (for validation)."""
    inputs = jnp.asarray(inputs, jnp.float32)
    if softmax:
        inputs = jax.nn.softmax(inputs, axis=1)
    onehot = jax.nn.one_hot(target, n_classes, axis=1, dtype=jnp.float32)
    if weight is None:
        weight = [1.0] * n_classes
    smooth = 1e-5
    loss = 0.0
    for i in range(n_classes):
        s = inputs[:, i]
        tg = onehot[:, i]
        intersect = jnp.sum(s * tg)
        y_sum = jnp.sum(tg * tg)
        z_sum = jnp.sum(s * s)
        dice = 1.0 - (2.0 * intersect + smooth) / (z_sum + y_sum + smooth)
        loss = loss + dice * weight[i]
    return loss / n_classes


if __name__ == "__main__":
    key = jax.random.PRNGKey(0)
    k1, k2, k3, k4, k5, k6 = jax.random.split(key, 6)

    # --- primary test: SwinUnet call pattern (softmax=True on logits) ---
    B, C, H, W = 2, 4, 16, 16
    logits = jax.random.normal(k1, (B, C, H, W), dtype=jnp.float32)
    target = jax.random.randint(k2, (B, H, W), 0, C, dtype=jnp.int32)

    loss = jax.block_until_ready(
        dice_loss_pallas(logits, target, n_classes=C, softmax=True))
    ref = dice_loss_reference(logits, target, n_classes=C, softmax=True)
    np.testing.assert_allclose(np.asarray(loss), np.asarray(ref),
                               rtol=1e-5, atol=1e-6)

    # --- no-softmax path (inputs already probabilities) ---
    probs = jax.nn.softmax(logits, axis=1)
    loss2 = jax.block_until_ready(
        dice_loss_pallas(probs, target, n_classes=C, softmax=False))
    ref2 = dice_loss_reference(probs, target, n_classes=C, softmax=False)
    np.testing.assert_allclose(np.asarray(loss2), np.asarray(ref2),
                               rtol=1e-5, atol=1e-6)

    # --- ragged tail (HW not a multiple of 128) + class weights ---
    B3, C3, H3, W3 = 2, 3, 15, 15
    logits3 = jax.random.normal(k3, (B3, C3, H3, W3), dtype=jnp.float32)
    target3 = jax.random.randint(k4, (B3, H3, W3), 0, C3, dtype=jnp.int32)
    wts = [0.3, 0.5, 0.2]
    loss3 = jax.block_until_ready(
        dice_loss_pallas(logits3, target3, n_classes=C3, weight=wts,
                         softmax=True))
    ref3 = dice_loss_reference(logits3, target3, n_classes=C3, weight=wts,
                               softmax=True)
    np.testing.assert_allclose(np.asarray(loss3), np.asarray(ref3),
                               rtol=1e-5, atol=1e-6)

    # --- B=1 (exercises the second parallel row axis) with bf16 logits ---
    B4, C4, H4, W4 = 1, 5, 48, 48
    logits4 = jax.random.normal(k5, (B4, C4, H4, W4), dtype=jnp.bfloat16)
    target4 = jax.random.randint(k6, (B4, H4, W4), 0, C4, dtype=jnp.int32)
    loss4 = jax.block_until_ready(
        dice_loss_pallas(logits4, target4, n_classes=C4, softmax=True))
    ref4 = dice_loss_reference(logits4, target4, n_classes=C4, softmax=True)
    np.testing.assert_allclose(np.asarray(loss4), np.asarray(ref4),
                               rtol=1e-4, atol=1e-5)

    print("KERNEL_OK")
</pallas_src>

<mosaic_0001>
module attributes {stable_mosaic.version = 11 : i64} {
  func.func @_dice_partial_kernel(%arg0: i32, %arg1: i32, %arg2: i32, %arg3: memref<1x4x8x128xf32, #tpu.memory_space<vmem>>, %arg4: memref<1x8x128xi32, #tpu.memory_space<vmem>>, %arg5: memref<1x1x4x128xf32, #tpu.memory_space<vmem>>, %arg6: memref<1x1x4x128xf32, #tpu.memory_space<vmem>>, %arg7: memref<1x1x4x128xf32, #tpu.memory_space<vmem>>) attributes {dimension_semantics = [#tpu.dimension_semantics<parallel>, #tpu.dimension_semantics<parallel>, #tpu.dimension_semantics<arbitrary>], iteration_bounds = array<i64: 2, 1, 1>, scalar_prefetch = 0 : i64, scratch_operands = 0 : i64, tpu.core_type = #tpu.core_type<tc>, window_params = [{transform_indices = @transform_0, window_bounds = array<i64: 1, 4, 8, 128>}, {transform_indices = @transform_1, window_bounds = array<i64: 1, 8, 128>}, {transform_indices = @transform_2, window_bounds = array<i64: 1, 1, 4, 128>}, {transform_indices = @transform_3, window_bounds = array<i64: 1, 1, 4, 128>}, {transform_indices = @transform_4, window_bounds = array<i64: 1, 1, 4, 128>}]} {
    %c0_i32 = arith.constant 0 : i32
    %0 = arith.cmpi eq, %arg2, %c0_i32 : i32
    %1 = arith.extui %0 : i1 to i32
    %c0_i32_0 = arith.constant 0 : i32
    %2 = arith.cmpi ne, %1, %c0_i32_0 : i32
    scf.if %2 {
      %cst_13 = arith.constant 0.000000e+00 : f32
      %31 = vector.broadcast %cst_13 : f32 to vector<4x128xf32>
      %c0_14 = arith.constant 0 : index
      %c0_15 = arith.constant 0 : index
      %c0_16 = arith.constant 0 : index
      %c0_17 = arith.constant 0 : index
      %32 = vector.load %arg5[%c0_14, %c0_15, %c0_16, %c0_17] : memref<1x1x4x128xf32, #tpu.memory_space<vmem>>, vector<1x1x4x128xf32>
      %33 = vector.shape_cast %32 : vector<1x1x4x128xf32> to vector<4x128xf32>
      %34 = vector.shape_cast %31 : vector<4x128xf32> to vector<1x1x4x128xf32>
      tpu.vector_store %arg5[%c0_14, %c0_15, %c0_16, %c0_17], %34 {strides = array<i32>} : memref<1x1x4x128xf32, #tpu.memory_space<vmem>>, vector<1x1x4x128xf32>,
      %cst_18 = arith.constant 0.000000e+00 : f32
      %35 = vector.broadcast %cst_18 : f32 to vector<4x128xf32>
      %c0_19 = arith.constant 0 : index
      %c0_20 = arith.constant 0 : index
      %c0_21 = arith.constant 0 : index
      %c0_22 = arith.constant 0 : index
      %36 = vector.load %arg6[%c0_19, %c0_20, %c0_21, %c0_22] : memref<1x1x4x128xf32, #tpu.memory_space<vmem>>, vector<1x1x4x128xf32>
      %37 = vector.shape_cast %36 : vector<1x1x4x128xf32> to vector<4x128xf32>
      %38 = vector.shape_cast %35 : vector<4x128xf32> to vector<1x1x4x128xf32>
      tpu.vector_store %arg6[%c0_19, %c0_20, %c0_21, %c0_22], %38 {strides = array<i32>} : memref<1x1x4x128xf32, #tpu.memory_space<vmem>>, vector<1x1x4x128xf32>,
      %cst_23 = arith.constant 0.000000e+00 : f32
      %39 = vector.broadcast %cst_23 : f32 to vector<4x128xf32>
      %c0_24 = arith.constant 0 : index
      %c0_25 = arith.constant 0 : index
      %c0_26 = arith.constant 0 : index
      %c0_27 = arith.constant 0 : index
      %40 = vector.load %arg7[%c0_24, %c0_25, %c0_26, %c0_27] : memref<1x1x4x128xf32, #tpu.memory_space<vmem>>, vector<1x1x4x128xf32>
      %41 = vector.shape_cast %40 : vector<1x1x4x128xf32> to vector<4x128xf32>
      %42 = vector.shape_cast %39 : vector<4x128xf32> to vector<1x1x4x128xf32>
      tpu.vector_store %arg7[%c0_24, %c0_25, %c0_26, %c0_27], %42 {strides = array<i32>} : memref<1x1x4x128xf32, #tpu.memory_space<vmem>>, vector<1x1x4x128xf32>,
    } else {
    }
    %c0 = arith.constant 0 : index
    %c0_1 = arith.constant 0 : index
    %c0_2 = arith.constant 0 : index
    %c0_3 = arith.constant 0 : index
    %3 = vector.load %arg3[%c0, %c0_1, %c0_2, %c0_3] : memref<1x4x8x128xf32, #tpu.memory_space<vmem>>, vector<1x4x8x128xf32>
    %4 = vector.shape_cast %3 : vector<1x4x8x128xf32> to vector<4x8x128xf32>
    %cst = arith.constant dense<0xFF800000> : vector<8x128xf32>
    %5 = vector.multi_reduction <maximumf>, %4, %cst [0] : vector<4x8x128xf32> to vector<8x128xf32>
    %6 = vector.shape_cast %5 : vector<8x128xf32> to vector<1x8x128xf32>
    %7 = vector.broadcast %6 : vector<1x8x128xf32> to vector<4x8x128xf32>
    %8 = arith.subf %4, %7 : vector<4x8x128xf32>
    %9 = math.exp %8 : vector<4x8x128xf32>
    %cst_4 = arith.constant dense<0.000000e+00> : vector<8x128xf32>
    %10 = vector.multi_reduction <add>, %9, %cst_4 [0] : vector<4x8x128xf32> to vector<8x128xf32>
    %11 = vector.shape_cast %10 : vector<8x128xf32> to vector<1x8x128xf32>
    %12 = tpu.reciprocal %11 {approx = true} : vector<1x8x128xf32> -> vector<1x8x128xf32>
    %13 = arith.mulf %11, %12 : vector<1x8x128xf32>
    %cst_5 = arith.constant 2.000000e+00 : f32
    %14 = vector.broadcast %cst_5 : f32 to vector<1x8x128xf32>
    %15 = arith.subf %14, %13 : vector<1x8x128xf32>
    %16 = arith.mulf %12, %15 : vector<1x8x128xf32>
    %17 = vector.broadcast %16 : vector<1x8x128xf32> to vector<4x8x128xf32>
    %18 = arith.mulf %9, %17 : vector<4x8x128xf32>
    %c0_6 = arith.constant 0 : index
    %c0_7 = arith.constant 0 : index
    %c0_8 = arith.constant 0 : index
    %19 = vector.load %arg4[%c0_6, %c0_7, %c0_8] : memref<1x8x128xi32, #tpu.memory_space<vmem>>, vector<1x8x128xi32>
    %20 = vector.shape_cast %19 : vector<1x8x128xi32> to vector<8x128xi32>
    %c1_i32 = arith.constant 1 : i32
    %21 = arith.muli %arg1, %c1_i32 : i32
    %22 = arith.addi %21, %arg2 : i32
    %c1_i32_9 = arith.constant 1 : i32
    %23 = arith.addi %22, %c1_i32_9 : i32
    %c1024_i32 = arith.constant 1024 : i32
    %24 = arith.muli %23, %c1024_i32 : i32
    %c256_i32 = arith.constant 256 : i32
    %25 = arith.cmpi sgt, %24, %c256_i32 : i32
    %26 = arith.extui %25 : i1 to i32
    %c0_i32_10 = arith.constant 0 : i32
    %27 = arith.cmpi ne, %26, %c0_i32_10 : i32
    scf.if %27 {
      %c1024_i32_13 = arith.constant 1024 : i32
      %31 = arith.muli %22, %c1024_i32_13 : i32
      %32 = tpu.iota {dimensions = array<i32: 0>} : vector<8x128xi32>
      %c128_i32 = arith.constant 128 : i32
      %33 = vector.broadcast %c128_i32 : i32 to vector<8x128xi32>
      %34 = arith.muli %32, %33 : vector<8x128xi32>
      %35 = vector.broadcast %31 : i32 to vector<8x128xi32>
      %36 = arith.addi %35, %34 : vector<8x128xi32>
      %37 = tpu.iota {dimensions = array<i32: 1>} : vector<8x128xi32>
      %38 = arith.addi %36, %37 : vector<8x128xi32>
      %c256_i32_14 = arith.constant 256 : i32
      %39 = vector.broadcast %c256_i32_14 : i32 to vector<8x128xi32>
      %40 = arith.cmpi slt, %38, %39 : vector<8x128xi32>
      %41 = vector.shape_cast %40 : vector<8x128xi1> to vector<1x8x128xi1>
      %cst_15 = arith.constant 0.000000e+00 : f32
      %42 = vector.shape_cast %41 : vector<1x8x128xi1> to vector<1x8x128xi1>
      %43 = vector.broadcast %42 : vector<1x8x128xi1> to vector<4x8x128xi1>
      %44 = vector.broadcast %cst_15 : f32 to vector<4x8x128xf32>
      %45 = arith.select %43, %18, %44 : vector<4x8x128xi1>, vector<4x8x128xf32>
      %46 = vector.extract_strided_slice %45 {offsets = [0, 0, 0], sizes = [1, 8, 128], strides = [1, 1, 1]} : vector<4x8x128xf32> to vector<1x8x128xf32>
      %47 = vector.shape_cast %46 : vector<1x8x128xf32> to vector<8x128xf32>
      %c0_i32_16 = arith.constant 0 : i32
      %48 = vector.broadcast %c0_i32_16 : i32 to vector<8x128xi32>
      %49 = arith.cmpi eq, %20, %48 : vector<8x128xi32>
      %c0_17 = arith.constant 0 : index
      %c0_18 = arith.constant 0 : index
      %c0_19 = arith.constant 0 : index
      %c0_20 = arith.constant 0 : index
      %50 = vector.load %arg5[%c0_17, %c0_18, %c0_19, %c0_20] : memref<1x1x4x128xf32, #tpu.memory_space<vmem>>, vector<1x1x1x128xf32>
      %51 = vector.shape_cast %50 : vector<1x1x1x128xf32> to vector<1x128xf32>
      %cst_21 = arith.constant 0.000000e+00 : f32
      %52 = vector.broadcast %cst_21 : f32 to vector<8x128xf32>
      %53 = arith.select %49, %47, %52 : vector<8x128xi1>, vector<8x128xf32>
      %cst_22 = arith.constant dense<0.000000e+00> : vector<128xf32>
      %54 = vector.multi_reduction <add>, %53, %cst_22 [0] : vector<8x128xf32> to vector<128xf32>
      %55 = vector.shape_cast %54 : vector<128xf32> to vector<1x128xf32>
      %56 = arith.addf %51, %55 : vector<1x128xf32>
      %c0_23 = arith.constant 0 : index
      %c0_24 = arith.constant 0 : index
      %c0_25 = arith.constant 0 : index
      %c0_26 = arith.constant 0 : index
      %57 = vector.load %arg5[%c0_23, %c0_24, %c0_25, %c0_26] : memref<1x1x4x128xf32, #tpu.memory_space<vmem>>, vector<1x1x1x128xf32>
      %58 = vector.shape_cast %57 : vector<1x1x1x128xf32> to vector<1x128xf32>
      %59 = vector.shape_cast %56 : vector<1x128xf32> to vector<1x1x1x128xf32>
      tpu.vector_store %arg5[%c0_23, %c0_24, %c0_25, %c0_26], %59 {strides = array<i32>} : memref<1x1x4x128xf32, #tpu.memory_space<vmem>>, vector<1x1x1x128xf32>,
      %c0_27 = arith.constant 0 : index
      %c0_28 = arith.constant 0 : index
      %c0_29 = arith.constant 0 : index
      %c0_30 = arith.constant 0 : index
      %60 = vector.load %arg6[%c0_27, %c0_28, %c0_29, %c0_30] : memref<1x1x4x128xf32, #tpu.memory_space<vmem>>, vector<1x1x1x128xf32>
      %61 = vector.shape_cast %60 : vector<1x1x1x128xf32> to vector<1x128xf32>
      %62 = arith.mulf %47, %47 : vector<8x128xf32>
      %cst_31 = arith.constant dense<0.000000e+00> : vector<128xf32>
      %63 = vector.multi_reduction <add>, %62, %cst_31 [0] : vector<8x128xf32> to vector<128xf32>
      %64 = vector.shape_cast %63 : vector<128xf32> to vector<1x128xf32>
      %65 = arith.addf %61, %64 : vector<1x128xf32>
      %c0_32 = arith.constant 0 : index
      %c0_33 = arith.constant 0 : index
      %c0_34 = arith.constant 0 : index
      %c0_35 = arith.constant 0 : index
      %66 = vector.load %arg6[%c0_32, %c0_33, %c0_34, %c0_35] : memref<1x1x4x128xf32, #tpu.memory_space<vmem>>, vector<1x1x1x128xf32>
      %67 = vector.shape_cast %66 : vector<1x1x1x128xf32> to vector<1x128xf32>
      %68 = vector.shape_cast %65 : vector<1x128xf32> to vector<1x1x1x128xf32>
      tpu.vector_store %arg6[%c0_32, %c0_33, %c0_34, %c0_35], %68 {strides = array<i32>} : memref<1x1x4x128xf32, #tpu.memory_space<vmem>>, vector<1x1x1x128xf32>,
      %c0_36 = arith.constant 0 : index
      %c0_37 = arith.constant 0 : index
      %c0_38 = arith.constant 0 : index
      %c0_39 = arith.constant 0 : index
      %69 = vector.load %arg7[%c0_36, %c0_37, %c0_38, %c0_39] : memref<1x1x4x128xf32, #tpu.memory_space<vmem>>, vector<1x1x1x128xf32>
      %70 = vector.shape_cast %69 : vector<1x1x1x128xf32> to vector<1x128xf32>
      %71 = arith.extui %49 : vector<8x128xi1> to vector<8x128xi32>
      %72 = arith.sitofp %71 : vector<8x128xi32> to vector<8x128xf32>
      %cst_40 = arith.constant dense<0.000000e+00> : vector<128xf32>
      %73 = vector.multi_reduction <add>, %72, %cst_40 [0] : vector<8x128xf32> to vector<128xf32>
      %74 = vector.shape_cast %73 : vector<128xf32> to vector<1x128xf32>
      %75 = arith.addf %70, %74 : vector<1x128xf32>
      %c0_41 = arith.constant 0 : index
      %c0_42 = arith.constant 0 : index
      %c0_43 = arith.constant 0 : index
      %c0_44 = arith.constant 0 : index
      %76 = vector.load %arg7[%c0_41, %c0_42, %c0_43, %c0_44] : memref<1x1x4x128xf32, #tpu.memory_space<vmem>>, vector<1x1x1x128xf32>
      %77 = vector.shape_cast %76 : vector<1x1x1x128xf32> to vector<1x128xf32>
      %78 = vector.shape_cast %75 : vector<1x128xf32> to vector<1x1x1x128xf32>
      tpu.vector_store %arg7[%c0_41, %c0_42, %c0_43, %c0_44], %78 {strides = array<i32>} : memref<1x1x4x128xf32, #tpu.memory_space<vmem>>, vector<1x1x1x128xf32>,
      %79 = vector.extract_strided_slice %45 {offsets = [1, 0, 0], sizes = [1, 8, 128], strides = [1, 1, 1]} : vector<4x8x128xf32> to vector<1x8x128xf32>
      %80 = vector.shape_cast %79 : vector<1x8x128xf32> to vector<8x128xf32>
      %c1_i32_45 = arith.constant 1 : i32
      %81 = vector.broadcast %c1_i32_45 : i32 to vector<8x128xi32>
      %82 = arith.cmpi eq, %20, %81 : vector<8x128xi32>
      %c0_46 = arith.constant 0 : index
      %c0_47 = arith.constant 0 : index
      %c1 = arith.constant 1 : index
      %c0_48 = arith.constant 0 : index
      %83 = vector.load %arg5[%c0_46, %c0_47, %c1, %c0_48] : memref<1x1x4x128xf32, #tpu.memory_space<vmem>>, vector<1x1x1x128xf32>
      %84 = vector.shape_cast %83 : vector<1x1x1x128xf32> to vector<1x128xf32>
      %cst_49 = arith.constant 0.000000e+00 : f32
      %85 = vector.broadcast %cst_49 : f32 to vector<8x128xf32>
      %86 = arith.select %82, %80, %85 : vector<8x128xi1>, vector<8x128xf32>
      %cst_50 = arith.constant dense<0.000000e+00> : vector<128xf32>
      %87 = vector.multi_reduction <add>, %86, %cst_50 [0] : vector<8x128xf32> to vector<128xf32>
      %88 = vector.shape_cast %87 : vector<128xf32> to vector<1x128xf32>
      %89 = arith.addf %84, %88 : vector<1x128xf32>
      %c0_51 = arith.constant 0 : index
      %c0_52 = arith.constant 0 : index
      %c1_53 = arith.constant 1 : index
      %c0_54 = arith.constant 0 : index
      %90 = vector.load %arg5[%c0_51, %c0_52, %c1_53, %c0_54] : memref<1x1x4x128xf32, #tpu.memory_space<vmem>>, vector<1x1x1x128xf32>
      %91 = vector.shape_cast %90 : vector<1x1x1x128xf32> to vector<1x128xf32>
      %92 = vector.shape_cast %89 : vector<1x128xf32> to vector<1x1x1x128xf32>
      tpu.vector_store %arg5[%c0_51, %c0_52, %c1_53, %c0_54], %92 {strides = array<i32>} : memref<1x1x4x128xf32, #tpu.memory_space<vmem>>, vector<1x1x1x128xf32>,
      %c0_55 = arith.constant 0 : index
      %c0_56 = arith.constant 0 : index
      %c1_57 = arith.constant 1 : index
      %c0_58 = arith.constant 0 : index
      %93 = vector.load %arg6[%c0_55, %c0_56, %c1_57, %c0_58] : memref<1x1x4x128xf32, #tpu.memory_space<vmem>>, vector<1x1x1x128xf32>
      %94 = vector.shape_cast %93 : vector<1x1x1x128xf32> to vector<1x128xf32>
      %95 = arith.mulf %80, %80 : vector<8x128xf32>
      %cst_59 = arith.constant dense<0.000000e+00> : vector<128xf32>
      %96 = vector.multi_reduction <add>, %95, %cst_59 [0] : vector<8x128xf32> to vector<128xf32>
      %97 = vector.shape_cast %96 : vector<128xf32> to vector<1x128xf32>
      %98 = arith.addf %94, %97 : vector<1x128xf32>
      %c0_60 = arith.constant 0 : index
      %c0_61 = arith.constant 0 : index
      %c1_62 = arith.constant 1 : index
      %c0_63 = arith.constant 0 : index
      %99 = vector.load %arg6[%c0_60, %c0_61, %c1_62, %c0_63] : memref<1x1x4x128xf32, #tpu.memory_space<vmem>>, vector<1x1x1x128xf32>
      %100 = vector.shape_cast %99 : vector<1x1x1x128xf32> to vector<1x128xf32>
      %101 = vector.shape_cast %98 : vector<1x128xf32> to vector<1x1x1x128xf32>
      tpu.vector_store %arg6[%c0_60, %c0_61, %c1_62, %c0_63], %101 {strides = array<i32>} : memref<1x1x4x128xf32, #tpu.memory_space<vmem>>, vector<1x1x1x128xf32>,
      %c0_64 = arith.constant 0 : index
      %c0_65 = arith.constant 0 : index
      %c1_66 = arith.constant 1 : index
      %c0_67 = arith.constant 0 : index
      %102 = vector.load %arg7[%c0_64, %c0_65, %c1_66, %c0_67] : memref<1x1x4x128xf32, #tpu.memory_space<vmem>>, vector<1x1x1x128xf32>
      %103 = vector.shape_cast %102 : vector<1x1x1x128xf32> to vector<1x128xf32>
      %104 = arith.extui %82 : vector<8x128xi1> to vector<8x128xi32>
      %105 = arith.sitofp %104 : vector<8x128xi32> to vector<8x128xf32>
      %cst_68 = arith.constant dense<0.000000e+00> : vector<128xf32>
      %106 = vector.multi_reduction <add>, %105, %cst_68 [0] : vector<8x128xf32> to vector<128xf32>
      %107 = vector.shape_cast %106 : vector<128xf32> to vector<1x128xf32>
      %108 = arith.addf %103, %107 : vector<1x128xf32>
      %c0_69 = arith.constant 0 : index
      %c0_70 = arith.constant 0 : index
      %c1_71 = arith.constant 1 : index
      %c0_72 = arith.constant 0 : index
      %109 = vector.load %arg7[%c0_69, %c0_70, %c1_71, %c0_72] : memref<1x1x4x128xf32, #tpu.memory_space<vmem>>, vector<1x1x1x128xf32>
      %110 = vector.shape_cast %109 : vector<1x1x1x128xf32> to vector<1x128xf32>
      %111 = vector.shape_cast %108 : vector<1x128xf32> to vector<1x1x1x128xf32>
      tpu.vector_store %arg7[%c0_69, %c0_70, %c1_71, %c0_72], %111 {strides = array<i32>} : memref<1x1x4x128xf32, #tpu.memory_space<vmem>>, vector<1x1x1x128xf32>,
      %112 = vector.extract_strided_slice %45 {offsets = [2, 0, 0], sizes = [1, 8, 128], strides = [1, 1, 1]} : vector<4x8x128xf32> to vector<1x8x128xf32>
      %113 = vector.shape_cast %112 : vector<1x8x128xf32> to vector<8x128xf32>
      %c2_i32 = arith.constant 2 : i32
      %114 = vector.broadcast %c2_i32 : i32 to vector<8x128xi32>
      %115 = arith.cmpi eq, %20, %114 : vector<8x128xi32>
      %c0_73 = arith.constant 0 : index
      %c0_74 = arith.constant 0 : index
      %c2 = arith.constant 2 : index
      %c0_75 = arith.constant 0 : index
      %116 = vector.load %arg5[%c0_73, %c0_74, %c2, %c0_75] : memref<1x1x4x128xf32, #tpu.memory_space<vmem>>, vector<1x1x1x128xf32>
      %117 = vector.shape_cast %116 : vector<1x1x1x128xf32> to vector<1x128xf32>
      %cst_76 = arith.constant 0.000000e+00 : f32
      %118 = vector.broadcast %cst_76 : f32 to vector<8x128xf32>
      %119 = arith.select %115, %113, %118 : vector<8x128xi1>, vector<8x128xf32>
      %cst_77 = arith.constant dense<0.000000e+00> : vector<128xf32>
      %120 = vector.multi_reduction <add>, %119, %cst_77 [0] : vector<8x128xf32> to vector<128xf32>
      %121 = vector.shape_cast %120 : vector<128xf32> to vector<1x128xf32>
      %122 = arith.addf %117, %121 : vector<1x128xf32>
      %c0_78 = arith.constant 0 : index
      %c0_79 = arith.constant 0 : index
      %c2_80 = arith.constant 2 : index
      %c0_81 = arith.constant 0 : index
      %123 = vector.load %arg5[%c0_78, %c0_79, %c2_80, %c0_81] : memref<1x1x4x128xf32, #tpu.memory_space<vmem>>, vector<1x1x1x128xf32>
      %124 = vector.shape_cast %123 : vector<1x1x1x128xf32> to vector<1x128xf32>
      %125 = vector.shape_cast %122 : vector<1x128xf32> to vector<1x1x1x128xf32>
      tpu.vector_store %arg5[%c0_78, %c0_79, %c2_80, %c0_81], %125 {strides = array<i32>} : memref<1x1x4x128xf32, #tpu.memory_space<vmem>>, vector<1x1x1x128xf32>,
      %c0_82 = arith.constant 0 : index
      %c0_83 = arith.constant 0 : index
      %c2_84 = arith.constant 2 : index
      %c0_85 = arith.constant 0 : index
      %126 = vector.load %arg6[%c0_82, %c0_83, %c2_84, %c0_85] : memref<1x1x4x128xf32, #tpu.memory_space<vmem>>, vector<1x1x1x128xf32>
      %127 = vector.shape_cast %126 : vector<1x1x1x128xf32> to vector<1x128xf32>
      %128 = arith.mulf %113, %113 : vector<8x128xf32>
      %cst_86 = arith.constant dense<0.000000e+00> : vector<128xf32>
      %129 = vector.multi_reduction <add>, %128, %cst_86 [0] : vector<8x128xf32> to vector<128xf32>
      %130 = vector.shape_cast %129 : vector<128xf32> to vector<1x128xf32>
      %131 = arith.addf %127, %130 : vector<1x128xf32>
      %c0_87 = arith.constant 0 : index
      %c0_88 = arith.constant 0 : index
      %c2_89 = arith.constant 2 : index
      %c0_90 = arith.constant 0 : index
      %132 = vector.load %arg6[%c0_87, %c0_88, %c2_89, %c0_90] : memref<1x1x4x128xf32, #tpu.memory_space<vmem>>, vector<1x1x1x128xf32>
      %133 = vector.shape_cast %132 : vector<1x1x1x128xf32> to vector<1x128xf32>
      %134 = vector.shape_cast %131 : vector<1x128xf32> to vector<1x1x1x128xf32>
      tpu.vector_store %arg6[%c0_87, %c0_88, %c2_89, %c0_90], %134 {strides = array<i32>} : memref<1x1x4x128xf32, #tpu.memory_space<vmem>>, vector<1x1x1x128xf32>,
      %c0_91 = arith.constant 0 : index
      %c0_92 = arith.constant 0 : index
      %c2_93 = arith.constant 2 : index
      %c0_94 = arith.constant 0 : index
      %135 = vector.load %arg7[%c0_91, %c0_92, %c2_93, %c0_94] : memref<1x1x4x128xf32, #tpu.memory_space<vmem>>, vector<1x1x1x128xf32>
      %136 = vector.shape_cast %135 : vector<1x1x1x128xf32> to vector<1x128xf32>
      %137 = arith.extui %115 : vector<8x128xi1> to vector<8x128xi32>
      %138 = arith.sitofp %137 : vector<8x128xi32> to vector<8x128xf32>
      %cst_95 = arith.constant dense<0.000000e+00> : vector<128xf32>
      %139 = vector.multi_reduction <add>, %138, %cst_95 [0] : vector<8x128xf32> to vector<128xf32>
      %140 = vector.shape_cast %139 : vector<128xf32> to vector<1x128xf32>
      %141 = arith.addf %136, %140 : vector<1x128xf32>
      %c0_96 = arith.constant 0 : index
      %c0_97 = arith.constant 0 : index
      %c2_98 = arith.constant 2 : index
      %c0_99 = arith.constant 0 : index
      %142 = vector.load %arg7[%c0_96, %c0_97, %c2_98, %c0_99] : memref<1x1x4x128xf32, #tpu.memory_space<vmem>>, vector<1x1x1x128xf32>
      %143 = vector.shape_cast %142 : vector<1x1x1x128xf32> to vector<1x128xf32>
      %144 = vector.shape_cast %141 : vector<1x128xf32> to vector<1x1x1x128xf32>
      tpu.vector_store %arg7[%c0_96, %c0_97, %c2_98, %c0_99], %144 {strides = array<i32>} : memref<1x1x4x128xf32, #tpu.memory_space<vmem>>, vector<1x1x1x128xf32>,
      %145 = vector.extract_strided_slice %45 {offsets = [3, 0, 0], sizes = [1, 8, 128], strides = [1, 1, 1]} : vector<4x8x128xf32> to vector<1x8x128xf32>
      %146 = vector.shape_cast %145 : vector<1x8x128xf32> to vector<8x128xf32>
      %c3_i32 = arith.constant 3 : i32
      %147 = vector.broadcast %c3_i32 : i32 to vector<8x128xi32>
      %148 = arith.cmpi eq, %20, %147 : vector<8x128xi32>
      %c0_100 = arith.constant 0 : index
      %c0_101 = arith.constant 0 : index
      %c3 = arith.constant 3 : index
      %c0_102 = arith.constant 0 : index
      %149 = vector.load %arg5[%c0_100, %c0_101, %c3, %c0_102] : memref<1x1x4x128xf32, #tpu.memory_space<vmem>>, vector<1x1x1x128xf32>
      %150 = vector.shape_cast %149 : vector<1x1x1x128xf32> to vector<1x128xf32>
      %cst_103 = arith.constant 0.000000e+00 : f32
      %151 = vector.broadcast %cst_103 : f32 to vector<8x128xf32>
      %152 = arith.select %148, %146, %151 : vector<8x128xi1>, vector<8x128xf32>
      %cst_104 = arith.constant dense<0.000000e+00> : vector<128xf32>
      %153 = vector.multi_reduction <add>, %152, %cst_104 [0] : vector<8x128xf32> to vector<128xf32>
      %154 = vector.shape_cast %153 : vector<128xf32> to vector<1x128xf32>
      %155 = arith.addf %150, %154 : vector<1x128xf32>
      %c0_105 = arith.constant 0 : index
      %c0_106 = arith.constant 0 : index
      %c3_107 = arith.constant 3 : index
      %c0_108 = arith.constant 0 : index
      %156 = vector.load %arg5[%c0_105, %c0_106, %c3_107, %c0_108] : memref<1x1x4x128xf32, #tpu.memory_space<vmem>>, vector<1x1x1x128xf32>
      %157 = vector.shape_cast %156 : vector<1x1x1x128xf32> to vector<1x128xf32>
      %158 = vector.shape_cast %155 : vector<1x128xf32> to vector<1x1x1x128xf32>
      tpu.vector_store %arg5[%c0_105, %c0_106, %c3_107, %c0_108], %158 {strides = array<i32>} : memref<1x1x4x128xf32, #tpu.memory_space<vmem>>, vector<1x1x1x128xf32>,
      %c0_109 = arith.constant 0 : index
      %c0_110 = arith.constant 0 : index
      %c3_111 = arith.constant 3 : index
      %c0_112 = arith.constant 0 : index
      %159 = vector.load %arg6[%c0_109, %c0_110, %c3_111, %c0_112] : memref<1x1x4x128xf32, #tpu.memory_space<vmem>>, vector<1x1x1x128xf32>
      %160 = vector.shape_cast %159 : vector<1x1x1x128xf32> to vector<1x128xf32>
      %161 = arith.mulf %146, %146 : vector<8x128xf32>
      %cst_113 = arith.constant dense<0.000000e+00> : vector<128xf32>
      %162 = vector.multi_reduction <add>, %161, %cst_113 [0] : vector<8x128xf32> to vector<128xf32>
      %163 = vector.shape_cast %162 : vector<128xf32> to vector<1x128xf32>
      %164 = arith.addf %160, %163 : vector<1x128xf32>
      %c0_114 = arith.constant 0 : index
      %c0_115 = arith.constant 0 : index
      %c3_116 = arith.constant 3 : index
      %c0_117 = arith.constant 0 : index
      %165 = vector.load %arg6[%c0_114, %c0_115, %c3_116, %c0_117] : memref<1x1x4x128xf32, #tpu.memory_space<vmem>>, vector<1x1x1x128xf32>
      %166 = vector.shape_cast %165 : vector<1x1x1x128xf32> to vector<1x128xf32>
      %167 = vector.shape_cast %164 : vector<1x128xf32> to vector<1x1x1x128xf32>
      tpu.vector_store %arg6[%c0_114, %c0_115, %c3_116, %c0_117], %167 {strides = array<i32>} : memref<1x1x4x128xf32, #tpu.memory_space<vmem>>, vector<1x1x1x128xf32>,
      %c0_118 = arith.constant 0 : index
      %c0_119 = arith.constant 0 : index
      %c3_120 = arith.constant 3 : index
      %c0_121 = arith.constant 0 : index
      %168 = vector.load %arg7[%c0_118, %c0_119, %c3_120, %c0_121] : memref<1x1x4x128xf32, #tpu.memory_space<vmem>>, vector<1x1x1x128xf32>
      %169 = vector.shape_cast %168 : vector<1x1x1x128xf32> to vector<1x128xf32>
      %170 = arith.extui %148 : vector<8x128xi1> to vector<8x128xi32>
      %171 = arith.sitofp %170 : vector<8x128xi32> to vector<8x128xf32>
      %cst_122 = arith.constant dense<0.000000e+00> : vector<128xf32>
      %172 = vector.multi_reduction <add>, %171, %cst_122 [0] : vector<8x128xf32> to vector<128xf32>
      %173 = vector.shape_cast %172 : vector<128xf32> to vector<1x128xf32>
      %174 = arith.addf %169, %173 : vector<1x128xf32>
      %c0_123 = arith.constant 0 : index
      %c0_124 = arith.constant 0 : index
      %c3_125 = arith.constant 3 : index
      %c0_126 = arith.constant 0 : index
      %175 = vector.load %arg7[%c0_123, %c0_124, %c3_125, %c0_126] : memref<1x1x4x128xf32, #tpu.memory_space<vmem>>, vector<1x1x1x128xf32>
      %176 = vector.shape_cast %175 : vector<1x1x1x128xf32> to vector<1x128xf32>
      %177 = vector.shape_cast %174 : vector<1x128xf32> to vector<1x1x1x128xf32>
      tpu.vector_store %arg7[%c0_123, %c0_124, %c3_125, %c0_126], %177 {strides = array<i32>} : memref<1x1x4x128xf32, #tpu.memory_space<vmem>>, vector<1x1x1x128xf32>,
    } else {
    }
    %c256_i32_11 = arith.constant 256 : i32
    %28 = arith.cmpi sle, %24, %c256_i32_11 : i32
    %29 = arith.extui %28 : i1 to i32
    %c0_i32_12 = arith.constant 0 : i32
    %30 = arith.cmpi ne, %29, %c0_i32_12 : i32
    scf.if %30 {
      %31 = vector.extract_strided_slice %18 {offsets = [0, 0, 0], sizes = [1, 8, 128], strides = [1, 1, 1]} : vector<4x8x128xf32> to vector<1x8x128xf32>
      %32 = vector.shape_cast %31 : vector<1x8x128xf32> to vector<8x128xf32>
      %c0_i32_13 = arith.constant 0 : i32
      %33 = vector.broadcast %c0_i32_13 : i32 to vector<8x128xi32>
      %34 = arith.cmpi eq, %20, %33 : vector<8x128xi32>
      %c0_14 = arith.constant 0 : index
      %c0_15 = arith.constant 0 : index
      %c0_16 = arith.constant 0 : index
      %c0_17 = arith.constant 0 : index
      %35 = vector.load %arg5[%c0_14, %c0_15, %c0_16, %c0_17] : memref<1x1x4x128xf32, #tpu.memory_space<vmem>>, vector<1x1x1x128xf32>
      %36 = vector.shape_cast %35 : vector<1x1x1x128xf32> to vector<1x128xf32>
      %cst_18 = arith.constant 0.000000e+00 : f32
      %37 = vector.broadcast %cst_18 : f32 to vector<8x128xf32>
      %38 = arith.select %34, %32, %37 : vector<8x128xi1>, vector<8x128xf32>
      %cst_19 = arith.constant dense<0.000000e+00> : vector<128xf32>
      %39 = vector.multi_reduction <add>, %38, %cst_19 [0] : vector<8x128xf32> to vector<128xf32>
      %40 = vector.shape_cast %39 : vector<128xf32> to vector<1x128xf32>
      %41 = arith.addf %36, %40 : vector<1x128xf32>
      %c0_20 = arith.constant 0 : index
      %c0_21 = arith.constant 0 : index
      %c0_22 = arith.constant 0 : index
      %c0_23 = arith.constant 0 : index
      %42 = vector.load %arg5[%c0_20, %c0_21, %c0_22, %c0_23] : memref<1x1x4x128xf32, #tpu.memory_space<vmem>>, vector<1x1x1x128xf32>
      %43 = vector.shape_cast %42 : vector<1x1x1x128xf32> to vector<1x128xf32>
      %44 = vector.shape_cast %41 : vector<1x128xf32> to vector<1x1x1x128xf32>
      tpu.vector_store %arg5[%c0_20, %c0_21, %c0_22, %c0_23], %44 {strides = array<i32>} : memref<1x1x4x128xf32, #tpu.memory_space<vmem>>, vector<1x1x1x128xf32>,
      %c0_24 = arith.constant 0 : index
      %c0_25 = arith.constant 0 : index
      %c0_26 = arith.constant 0 : index
      %c0_27 = arith.constant 0 : index
      %45 = vector.load %arg6[%c0_24, %c0_25, %c0_26, %c0_27] : memref<1x1x4x128xf32, #tpu.memory_space<vmem>>, vector<1x1x1x128xf32>
      %46 = vector.shape_cast %45 : vector<1x1x1x128xf32> to vector<1x128xf32>
      %47 = arith.mulf %32, %32 : vector<8x128xf32>
      %cst_28 = arith.constant dense<0.000000e+00> : vector<128xf32>
      %48 = vector.multi_reduction <add>, %47, %cst_28 [0] : vector<8x128xf32> to vector<128xf32>
      %49 = vector.shape_cast %48 : vector<128xf32> to vector<1x128xf32>
      %50 = arith.addf %46, %49 : vector<1x128xf32>
      %c0_29 = arith.constant 0 : index
      %c0_30 = arith.constant 0 : index
      %c0_31 = arith.constant 0 : index
      %c0_32 = arith.constant 0 : index
      %51 = vector.load %arg6[%c0_29, %c0_30, %c0_31, %c0_32] : memref<1x1x4x128xf32, #tpu.memory_space<vmem>>, vector<1x1x1x128xf32>
      %52 = vector.shape_cast %51 : vector<1x1x1x128xf32> to vector<1x128xf32>
      %53 = vector.shape_cast %50 : vector<1x128xf32> to vector<1x1x1x128xf32>
      tpu.vector_store %arg6[%c0_29, %c0_30, %c0_31, %c0_32], %53 {strides = array<i32>} : memref<1x1x4x128xf32, #tpu.memory_space<vmem>>, vector<1x1x1x128xf32>,
      %c0_33 = arith.constant 0 : index
      %c0_34 = arith.constant 0 : index
      %c0_35 = arith.constant 0 : index
      %c0_36 = arith.constant 0 : index
      %54 = vector.load %arg7[%c0_33, %c0_34, %c0_35, %c0_36] : memref<1x1x4x128xf32, #tpu.memory_space<vmem>>, vector<1x1x1x128xf32>
      %55 = vector.shape_cast %54 : vector<1x1x1x128xf32> to vector<1x128xf32>
      %56 = arith.extui %34 : vector<8x128xi1> to vector<8x128xi32>
      %57 = arith.sitofp %56 : vector<8x128xi32> to vector<8x128xf32>
      %cst_37 = arith.constant dense<0.000000e+00> : vector<128xf32>
      %58 = vector.multi_reduction <add>, %57, %cst_37 [0] : vector<8x128xf32> to vector<128xf32>
      %59 = vector.shape_cast %58 : vector<128xf32> to vector<1x128xf32>
      %60 = arith.addf %55, %59 : vector<1x128xf32>
      %c0_38 = arith.constant 0 : index
      %c0_39 = arith.constant 0 : index
      %c0_40 = arith.constant 0 : index
      %c0_41 = arith.constant 0 : index
      %61 = vector.load %arg7[%c0_38, %c0_39, %c0_40, %c0_41] : memref<1x1x4x128xf32, #tpu.memory_space<vmem>>, vector<1x1x1x128xf32>
      %62 = vector.shape_cast %61 : vector<1x1x1x128xf32> to vector<1x128xf32>
      %63 = vector.shape_cast %60 : vector<1x128xf32> to vector<1x1x1x128xf32>
      tpu.vector_store %arg7[%c0_38, %c0_39, %c0_40, %c0_41], %63 {strides = array<i32>} : memref<1x1x4x128xf32, #tpu.memory_space<vmem>>, vector<1x1x1x128xf32>,
      %64 = vector.extract_strided_slice %18 {offsets = [1, 0, 0], sizes = [1, 8, 128], strides = [1, 1, 1]} : vector<4x8x128xf32> to vector<1x8x128xf32>
      %65 = vector.shape_cast %64 : vector<1x8x128xf32> to vector<8x128xf32>
      %c1_i32_42 = arith.constant 1 : i32
      %66 = vector.broadcast %c1_i32_42 : i32 to vector<8x128xi32>
      %67 = arith.cmpi eq, %20, %66 : vector<8x128xi32>
      %c0_43 = arith.constant 0 : index
      %c0_44 = arith.constant 0 : index
      %c1 = arith.constant 1 : index
      %c0_45 = arith.constant 0 : index
      %68 = vector.load %arg5[%c0_43, %c0_44, %c1, %c0_45] : memref<1x1x4x128xf32, #tpu.memory_space<vmem>>, vector<1x1x1x128xf32>
      %69 = vector.shape_cast %68 : vector<1x1x1x128xf32> to vector<1x128xf32>
      %cst_46 = arith.constant 0.000000e+00 : f32
      %70 = vector.broadcast %cst_46 : f32 to vector<8x128xf32>
      %71 = arith.select %67, %65, %70 : vector<8x128xi1>, vector<8x128xf32>
      %cst_47 = arith.constant dense<0.000000e+00> : vector<128xf32>
      %72 = vector.multi_reduction <add>, %71, %cst_47 [0] : vector<8x128xf32> to vector<128xf32>
      %73 = vector.shape_cast %72 : vector<128xf32> to vector<1x128xf32>
      %74 = arith.addf %69, %73 : vector<1x128xf32>
      %c0_48 = arith.constant 0 : index
      %c0_49 = arith.constant 0 : index
      %c1_50 = arith.constant 1 : index
      %c0_51 = arith.constant 0 : index
      %75 = vector.load %arg5[%c0_48, %c0_49, %c1_50, %c0_51] : memref<1x1x4x128xf32, #tpu.memory_space<vmem>>, vector<1x1x1x128xf32>
      %76 = vector.shape_cast %75 : vector<1x1x1x128xf32> to vector<1x128xf32>
      %77 = vector.shape_cast %74 : vector<1x128xf32> to vector<1x1x1x128xf32>
      tpu.vector_store %arg5[%c0_48, %c0_49, %c1_50, %c0_51], %77 {strides = array<i32>} : memref<1x1x4x128xf32, #tpu.memory_space<vmem>>, vector<1x1x1x128xf32>,
      %c0_52 = arith.constant 0 : index
      %c0_53 = arith.constant 0 : index
      %c1_54 = arith.constant 1 : index
      %c0_55 = arith.constant 0 : index
      %78 = vector.load %arg6[%c0_52, %c0_53, %c1_54, %c0_55] : memref<1x1x4x128xf32, #tpu.memory_space<vmem>>, vector<1x1x1x128xf32>
      %79 = vector.shape_cast %78 : vector<1x1x1x128xf32> to vector<1x128xf32>
      %80 = arith.mulf %65, %65 : vector<8x128xf32>
      %cst_56 = arith.constant dense<0.000000e+00> : vector<128xf32>
      %81 = vector.multi_reduction <add>, %80, %cst_56 [0] : vector<8x128xf32> to vector<128xf32>
      %82 = vector.shape_cast %81 : vector<128xf32> to vector<1x128xf32>
      %83 = arith.addf %79, %82 : vector<1x128xf32>
      %c0_57 = arith.constant 0 : index
      %c0_58 = arith.constant 0 : index
      %c1_59 = arith.constant 1 : index
      %c0_60 = arith.constant 0 : index
      %84 = vector.load %arg6[%c0_57, %c0_58, %c1_59, %c0_60] : memref<1x1x4x128xf32, #tpu.memory_space<vmem>>, vector<1x1x1x128xf32>
      %85 = vector.shape_cast %84 : vector<1x1x1x128xf32> to vector<1x128xf32>
      %86 = vector.shape_cast %83 : vector<1x128xf32> to vector<1x1x1x128xf32>
      tpu.vector_store %arg6[%c0_57, %c0_58, %c1_59, %c0_60], %86 {strides = array<i32>} : memref<1x1x4x128xf32, #tpu.memory_space<vmem>>, vector<1x1x1x128xf32>,
      %c0_61 = arith.constant 0 : index
      %c0_62 = arith.constant 0 : index
      %c1_63 = arith.constant 1 : index
      %c0_64 = arith.constant 0 : index
      %87 = vector.load %arg7[%c0_61, %c0_62, %c1_63, %c0_64] : memref<1x1x4x128xf32, #tpu.memory_space<vmem>>, vector<1x1x1x128xf32>
      %88 = vector.shape_cast %87 : vector<1x1x1x128xf32> to vector<1x128xf32>
      %89 = arith.extui %67 : vector<8x128xi1> to vector<8x128xi32>
      %90 = arith.sitofp %89 : vector<8x128xi32> to vector<8x128xf32>
      %cst_65 = arith.constant dense<0.000000e+00> : vector<128xf32>
      %91 = vector.multi_reduction <add>, %90, %cst_65 [0] : vector<8x128xf32> to vector<128xf32>
      %92 = vector.shape_cast %91 : vector<128xf32> to vector<1x128xf32>
      %93 = arith.addf %88, %92 : vector<1x128xf32>
      %c0_66 = arith.constant 0 : index
      %c0_67 = arith.constant 0 : index
      %c1_68 = arith.constant 1 : index
      %c0_69 = arith.constant 0 : index
      %94 = vector.load %arg7[%c0_66, %c0_67, %c1_68, %c0_69] : memref<1x1x4x128xf32, #tpu.memory_space<vmem>>, vector<1x1x1x128xf32>
      %95 = vector.shape_cast %94 : vector<1x1x1x128xf32> to vector<1x128xf32>
      %96 = vector.shape_cast %93 : vector<1x128xf32> to vector<1x1x1x128xf32>
      tpu.vector_store %arg7[%c0_66, %c0_67, %c1_68, %c0_69], %96 {strides = array<i32>} : memref<1x1x4x128xf32, #tpu.memory_space<vmem>>, vector<1x1x1x128xf32>,
      %97 = vector.extract_strided_slice %18 {offsets = [2, 0, 0], sizes = [1, 8, 128], strides = [1, 1, 1]} : vector<4x8x128xf32> to vector<1x8x128xf32>
      %98 = vector.shape_cast %97 : vector<1x8x128xf32> to vector<8x128xf32>
      %c2_i32 = arith.constant 2 : i32
      %99 = vector.broadcast %c2_i32 : i32 to vector<8x128xi32>
      %100 = arith.cmpi eq, %20, %99 : vector<8x128xi32>
      %c0_70 = arith.constant 0 : index
      %c0_71 = arith.constant 0 : index
      %c2 = arith.constant 2 : index
      %c0_72 = arith.constant 0 : index
      %101 = vector.load %arg5[%c0_70, %c0_71, %c2, %c0_72] : memref<1x1x4x128xf32, #tpu.memory_space<vmem>>, vector<1x1x1x128xf32>
      %102 = vector.shape_cast %101 : vector<1x1x1x128xf32> to vector<1x128xf32>
      %cst_73 = arith.constant 0.000000e+00 : f32
      %103 = vector.broadcast %cst_73 : f32 to vector<8x128xf32>
      %104 = arith.select %100, %98, %103 : vector<8x128xi1>, vector<8x128xf32>
      %cst_74 = arith.constant dense<0.000000e+00> : vector<128xf32>
      %105 = vector.multi_reduction <add>, %104, %cst_74 [0] : vector<8x128xf32> to vector<128xf32>
      %106 = vector.shape_cast %105 : vector<128xf32> to vector<1x128xf32>
      %107 = arith.addf %102, %106 : vector<1x128xf32>
      %c0_75 = arith.constant 0 : index
      %c0_76 = arith.constant 0 : index
      %c2_77 = arith.constant 2 : index
      %c0_78 = arith.constant 0 : index
      %108 = vector.load %arg5[%c0_75, %c0_76, %c2_77, %c0_78] : memref<1x1x4x128xf32, #tpu.memory_space<vmem>>, vector<1x1x1x128xf32>
      %109 = vector.shape_cast %108 : vector<1x1x1x128xf32> to vector<1x128xf32>
      %110 = vector.shape_cast %107 : vector<1x128xf32> to vector<1x1x1x128xf32>
      tpu.vector_store %arg5[%c0_75, %c0_76, %c2_77, %c0_78], %110 {strides = array<i32>} : memref<1x1x4x128xf32, #tpu.memory_space<vmem>>, vector<1x1x1x128xf32>,
      %c0_79 = arith.constant 0 : index
      %c0_80 = arith.constant 0 : index
      %c2_81 = arith.constant 2 : index
      %c0_82 = arith.constant 0 : index
      %111 = vector.load %arg6[%c0_79, %c0_80, %c2_81, %c0_82] : memref<1x1x4x128xf32, #tpu.memory_space<vmem>>, vector<1x1x1x128xf32>
      %112 = vector.shape_cast %111 : vector<1x1x1x128xf32> to vector<1x128xf32>
      %113 = arith.mulf %98, %98 : vector<8x128xf32>
      %cst_83 = arith.constant dense<0.000000e+00> : vector<128xf32>
      %114 = vector.multi_reduction <add>, %113, %cst_83 [0] : vector<8x128xf32> to vector<128xf32>
      %115 = vector.shape_cast %114 : vector<128xf32> to vector<1x128xf32>
      %116 = arith.addf %112, %115 : vector<1x128xf32>
      %c0_84 = arith.constant 0 : index
      %c0_85 = arith.constant 0 : index
      %c2_86 = arith.constant 2 : index
      %c0_87 = arith.constant 0 : index
      %117 = vector.load %arg6[%c0_84, %c0_85, %c2_86, %c0_87] : memref<1x1x4x128xf32, #tpu.memory_space<vmem>>, vector<1x1x1x128xf32>
      %118 = vector.shape_cast %117 : vector<1x1x1x128xf32> to vector<1x128xf32>
      %119 = vector.shape_cast %116 : vector<1x128xf32> to vector<1x1x1x128xf32>
      tpu.vector_store %arg6[%c0_84, %c0_85, %c2_86, %c0_87], %119 {strides = array<i32>} : memref<1x1x4x128xf32, #tpu.memory_space<vmem>>, vector<1x1x1x128xf32>,
      %c0_88 = arith.constant 0 : index
      %c0_89 = arith.constant 0 : index
      %c2_90 = arith.constant 2 : index
      %c0_91 = arith.constant 0 : index
      %120 = vector.load %arg7[%c0_88, %c0_89, %c2_90, %c0_91] : memref<1x1x4x128xf32, #tpu.memory_space<vmem>>, vector<1x1x1x128xf32>
      %121 = vector.shape_cast %120 : vector<1x1x1x128xf32> to vector<1x128xf32>
      %122 = arith.extui %100 : vector<8x128xi1> to vector<8x128xi32>
      %123 = arith.sitofp %122 : vector<8x128xi32> to vector<8x128xf32>
      %cst_92 = arith.constant dense<0.000000e+00> : vector<128xf32>
      %124 = vector.multi_reduction <add>, %123, %cst_92 [0] : vector<8x128xf32> to vector<128xf32>
      %125 = vector.shape_cast %124 : vector<128xf32> to vector<1x128xf32>
      %126 = arith.addf %121, %125 : vector<1x128xf32>
      %c0_93 = arith.constant 0 : index
      %c0_94 = arith.constant 0 : index
      %c2_95 = arith.constant 2 : index
      %c0_96 = arith.constant 0 : index
      %127 = vector.load %arg7[%c0_93, %c0_94, %c2_95, %c0_96] : memref<1x1x4x128xf32, #tpu.memory_space<vmem>>, vector<1x1x1x128xf32>
      %128 = vector.shape_cast %127 : vector<1x1x1x128xf32> to vector<1x128xf32>
      %129 = vector.shape_cast %126 : vector<1x128xf32> to vector<1x1x1x128xf32>
      tpu.vector_store %arg7[%c0_93, %c0_94, %c2_95, %c0_96], %129 {strides = array<i32>} : memref<1x1x4x128xf32, #tpu.memory_space<vmem>>, vector<1x1x1x128xf32>,
      %130 = vector.extract_strided_slice %18 {offsets = [3, 0, 0], sizes = [1, 8, 128], strides = [1, 1, 1]} : vector<4x8x128xf32> to vector<1x8x128xf32>
      %131 = vector.shape_cast %130 : vector<1x8x128xf32> to vector<8x128xf32>
      %c3_i32 = arith.constant 3 : i32
      %132 = vector.broadcast %c3_i32 : i32 to vector<8x128xi32>
      %133 = arith.cmpi eq, %20, %132 : vector<8x128xi32>
      %c0_97 = arith.constant 0 : index
      %c0_98 = arith.constant 0 : index
      %c3 = arith.constant 3 : index
      %c0_99 = arith.constant 0 : index
      %134 = vector.load %arg5[%c0_97, %c0_98, %c3, %c0_99] : memref<1x1x4x128xf32, #tpu.memory_space<vmem>>, vector<1x1x1x128xf32>
      %135 = vector.shape_cast %134 : vector<1x1x1x128xf32> to vector<1x128xf32>
      %cst_100 = arith.constant 0.000000e+00 : f32
      %136 = vector.broadcast %cst_100 : f32 to vector<8x128xf32>
      %137 = arith.select %133, %131, %136 : vector<8x128xi1>, vector<8x128xf32>
      %cst_101 = arith.constant dense<0.000000e+00> : vector<128xf32>
      %138 = vector.multi_reduction <add>, %137, %cst_101 [0] : vector<8x128xf32> to vector<128xf32>
      %139 = vector.shape_cast %138 : vector<128xf32> to vector<1x128xf32>
      %140 = arith.addf %135, %139 : vector<1x128xf32>
      %c0_102 = arith.constant 0 : index
      %c0_103 = arith.constant 0 : index
      %c3_104 = arith.constant 3 : index
      %c0_105 = arith.constant 0 : index
      %141 = vector.load %arg5[%c0_102, %c0_103, %c3_104, %c0_105] : memref<1x1x4x128xf32, #tpu.memory_space<vmem>>, vector<1x1x1x128xf32>
      %142 = vector.shape_cast %141 : vector<1x1x1x128xf32> to vector<1x128xf32>
      %143 = vector.shape_cast %140 : vector<1x128xf32> to vector<1x1x1x128xf32>
      tpu.vector_store %arg5[%c0_102, %c0_103, %c3_104, %c0_105], %143 {strides = array<i32>} : memref<1x1x4x128xf32, #tpu.memory_space<vmem>>, vector<1x1x1x128xf32>,
      %c0_106 = arith.constant 0 : index
      %c0_107 = arith.constant 0 : index
      %c3_108 = arith.constant 3 : index
      %c0_109 = arith.constant 0 : index
      %144 = vector.load %arg6[%c0_106, %c0_107, %c3_108, %c0_109] : memref<1x1x4x128xf32, #tpu.memory_space<vmem>>, vector<1x1x1x128xf32>
      %145 = vector.shape_cast %144 : vector<1x1x1x128xf32> to vector<1x128xf32>
      %146 = arith.mulf %131, %131 : vector<8x128xf32>
      %cst_110 = arith.constant dense<0.000000e+00> : vector<128xf32>
      %147 = vector.multi_reduction <add>, %146, %cst_110 [0] : vector<8x128xf32> to vector<128xf32>
      %148 = vector.shape_cast %147 : vector<128xf32> to vector<1x128xf32>
      %149 = arith.addf %145, %148 : vector<1x128xf32>
      %c0_111 = arith.constant 0 : index
      %c0_112 = arith.constant 0 : index
      %c3_113 = arith.constant 3 : index
      %c0_114 = arith.constant 0 : index
      %150 = vector.load %arg6[%c0_111, %c0_112, %c3_113, %c0_114] : memref<1x1x4x128xf32, #tpu.memory_space<vmem>>, vector<1x1x1x128xf32>
      %151 = vector.shape_cast %150 : vector<1x1x1x128xf32> to vector<1x128xf32>
      %152 = vector.shape_cast %149 : vector<1x128xf32> to vector<1x1x1x128xf32>
      tpu.vector_store %arg6[%c0_111, %c0_112, %c3_113, %c0_114], %152 {strides = array<i32>} : memref<1x1x4x128xf32, #tpu.memory_space<vmem>>, vector<1x1x1x128xf32>,
      %c0_115 = arith.constant 0 : index
      %c0_116 = arith.constant 0 : index
      %c3_117 = arith.constant 3 : index
      %c0_118 = arith.constant 0 : index
      %153 = vector.load %arg7[%c0_115, %c0_116, %c3_117, %c0_118] : memref<1x1x4x128xf32, #tpu.memory_space<vmem>>, vector<1x1x1x128xf32>
      %154 = vector.shape_cast %153 : vector<1x1x1x128xf32> to vector<1x128xf32>
      %155 = arith.extui %133 : vector<8x128xi1> to vector<8x128xi32>
      %156 = arith.sitofp %155 : vector<8x128xi32> to vector<8x128xf32>
      %cst_119 = arith.constant dense<0.000000e+00> : vector<128xf32>
      %157 = vector.multi_reduction <add>, %156, %cst_119 [0] : vector<8x128xf32> to vector<128xf32>
      %158 = vector.shape_cast %157 : vector<128xf32> to vector<1x128xf32>
      %159 = arith.addf %154, %158 : vector<1x128xf32>
      %c0_120 = arith.constant 0 : index
      %c0_121 = arith.constant 0 : index
      %c3_122 = arith.constant 3 : index
      %c0_123 = arith.constant 0 : index
      %160 = vector.load %arg7[%c0_120, %c0_121, %c3_122, %c0_123] : memref<1x1x4x128xf32, #tpu.memory_space<vmem>>, vector<1x1x1x128xf32>
      %161 = vector.shape_cast %160 : vector<1x1x1x128xf32> to vector<1x128xf32>
      %162 = vector.shape_cast %159 : vector<1x128xf32> to vector<1x1x1x128xf32>
      tpu.vector_store %arg7[%c0_120, %c0_121, %c3_122, %c0_123], %162 {strides = array<i32>} : memref<1x1x4x128xf32, #tpu.memory_space<vmem>>, vector<1x1x1x128xf32>,
    } else {
    }
    return
  }
  func.func @transform_0(%arg0: i32, %arg1: i32, %arg2: i32) -> (i32, i32, i32, i32) {
    %c1_i32 = arith.constant 1 : i32
    %0 = arith.muli %arg1, %c1_i32 : i32
    %1 = arith.addi %0, %arg2 : i32
    %c0_i32 = arith.constant 0 : i32
    %c0_i32_0 = arith.constant 0 : i32
    %c0_i32_1 = arith.constant 0 : i32
    return %arg0, %c0_i32, %1, %c0_i32_0 : i32, i32, i32, i32
  }
  func.func @transform_1(%arg0: i32, %arg1: i32, %arg2: i32) -> (i32, i32, i32) {
    %c1_i32 = arith.constant 1 : i32
    %0 = arith.muli %arg1, %c1_i32 : i32
    %1 = arith.addi %0, %arg2 : i32
    %c0_i32 = arith.constant 0 : i32
    %c0_i32_0 = arith.constant 0 : i32
    return %arg0, %1, %c0_i32 : i32, i32, i32
  }
  func.func @transform_2(%arg0: i32, %arg1: i32, %arg2: i32) -> (i32, i32, i32, i32) {
    %c0_i32 = arith.constant 0 : i32
    %c0_i32_0 = arith.constant 0 : i32
    %c0_i32_1 = arith.constant 0 : i32
    return %arg0, %arg1, %c0_i32, %c0_i32_0 : i32, i32, i32, i32
  }
  func.func @transform_3(%arg0: i32, %arg1: i32, %arg2: i32) -> (i32, i32, i32, i32) {
    %c0_i32 = arith.constant 0 : i32
    %c0_i32_0 = arith.constant 0 : i32
    %c0_i32_1 = arith.constant 0 : i32
    return %arg0, %arg1, %c0_i32, %c0_i32_0 : i32, i32, i32, i32
  }
  func.func @transform_4(%arg0: i32, %arg1: i32, %arg2: i32) -> (i32, i32, i32, i32) {
    %c0_i32 = arith.constant 0 : i32
    %c0_i32_0 = arith.constant 0 : i32
    %c0_i32_1 = arith.constant 0 : i32
    return %arg0, %arg1, %c0_i32, %c0_i32_0 : i32, i32, i32, i32
  }
}

</mosaic_0001>

<llo_original>
// kernel: tpu_custom_call.1
$region0: #{tpu_custom_call.1}
  #allocation0 [shape = 'u32[]', space=smem, size = 0x4, offset = 0x4, fixed_abs, tag = 'smem constant byte address 0x4 - core index']
  #allocation1 [shape = 'u32[72,128]{1,0:T(1,128)}', space=vmem, size = 0x9000, scoped, tag = 'internal scratch']
  %s0 = inlined_call_operand.hbm [shape: f32[2,4,8,128], index: 0, kind: input, shape index: {}]
  %s1 = inlined_call_operand.hbm [shape: s32[2,8,128], index: 1, kind: input, shape index: {}]
  %s2 = inlined_call_operand.hbm [shape: f32[2,1,4,128], index: 2, kind: output, shape index: {0}]
  %s3 = inlined_call_operand.hbm [shape: f32[2,1,4,128], index: 3, kind: output, shape index: {1}]
  %s4 = inlined_call_operand.hbm [shape: f32[2,1,4,128], index: 4, kind: output, shape index: {2}]
  %5 = xla_tuple %s2, %s3, %s4
  %s6 = sld [smem:[#allocation0]]
  $region77: #{tpu_custom_call.1} parent=0
    _
  %s8 = ssub.s32 1, %s6
  %s9 = scalar_select 0, %s8, %s6
  $region1: #{tpu_custom_call.1} parent=0
    #allocation2 [shape = 'u8[32768]{0}', space=vmem, size = 0x8000, scoped, tag = 'input window, operand 0']
    #allocation3 [shape = 's32[2]{0}', space=sflag, size = 0x8, scoped, tag = 'scoped memory for tpu_custom_call.1']
    #allocation4 [shape = 's32[2]{0}', space=sflag, size = 0x8, scoped, tag = 'scoped memory for tpu_custom_call.1']
    #allocation5 [shape = 'u8[8192]{0}', space=vmem, size = 0x2000, scoped, tag = 'input window, operand 1']
    #allocation6 [shape = 's32[2]{0}', space=sflag, size = 0x8, scoped, tag = 'scoped memory for tpu_custom_call.1']
    #allocation7 [shape = 'u8[4096]{0}', space=vmem, size = 0x1000, scoped, tag = 'output window, operand 0']
    #allocation8 [shape = 'u8[4096]{0}', space=vmem, size = 0x1000, scoped, tag = 'output window, operand 1']
    #allocation9 [shape = 's32[2]{0}', space=sflag, size = 0x8, scoped, tag = 'scoped memory for tpu_custom_call.1']
    #allocation10 [shape = 'u8[4096]{0}', space=vmem, size = 0x1000, scoped, tag = 'output window, operand 2']
    %10 = vsyncpa [#allocation3], 0
    %s11 = scalar_lea.sflag [#allocation3], 1
    %12 = vsyncpa %s11, 0
    %13 = vsyncpa [#allocation6], 0
    %s14 = scalar_lea.sflag [#allocation6], 1
    %15 = vsyncpa %s14, 0
    %16 = vsyncpa [#allocation4], 0
    %s17 = scalar_lea.sflag [#allocation4], 1
    %18 = vsyncpa %s17, 0
    %19 = vsyncpa [#allocation9], 0
    %s20 = scalar_lea.sflag [#allocation9], 1
    %21 = vsyncpa %s20, 0
    loop: start=0, step=1, limit=4
    $region2: #{tpu_custom_call.1} parent=1 // loop_pre_header
      _
    $region3: #{tpu_custom_call.1} parent=1 // loop_header
      %s23 = sphi 0, %s27
      %p24 = scmp.ge.s32.totalorder %s23, 4
      %s30 = sphi 0, %s49
      %s31 = sphi 0, %s45
      %s32 = sphi 0, %s41
      %s33 = sphi 0, %s30
      %s34 = sphi 0, %s31
      %s35 = sphi 0, %s32
      %s36 = sphi 0, %s33
      %s37 = sphi 0, %s34
      %s38 = sphi 0, %s35
      %s56 = sphi 0, %s58
      %s59 = sphi 0, %s56
      %s60 = sphi 0, %s59
      %s76 = sphi 0, %s60
      %s86 = sphi 0, %s88
      %s89 = sphi 0, %s86
      %s90 = sphi 0, %s89
      %s106 = sphi 0, %s90
      %s114 = sphi 0, %s116
      %s117 = sphi 0, %s114
      %s118 = sphi 0, %s117
      %s134 = sphi 0, %s118
      %s142 = sphi 0, %s144
      %s145 = sphi 0, %s142
      %s146 = sphi 0, %s145
      %s162 = sphi 0, %s146
      %s170 = sphi 0, %s172
      %s173 = sphi 0, %s170
      %s174 = sphi 0, %s173
      %s190 = sphi 0, %s174
    $region4: #{tpu_custom_call.1} parent=1 // loop_header_branch
      %26 = sbr.rel (%p24) target = $region8
    $region5: #{tpu_custom_call.1} parent=1 // loop_body
      %s28 = ssub.s32 %s23, 1
      %s29 = ssub.s32 %s23, 2
      %s39 = sadd.s32 1, %s32
      %p40 = scmp.ge.s32.totalorder %s39, 1
      %s41 = scalar_select %p40, 0, %s39
      %s42 = sadd.s32 1, %s31
      %s43 = scalar_select %p40, %s42, %s31
      %p44 = scmp.ge.s32.totalorder %s43, 1
      %s45 = scalar_select %p44, 0, %s43
      %s46 = sadd.s32 1, %s30
      %s47 = scalar_select %p44, %s46, %s30
      %p48 = scmp.ge.s32.totalorder %s47, 2
      %s49 = scalar_select %p48, 0, %s47
      %s50 = sadd.s32 %s31, %s32
      %s51 = sadd.s32 %s45, %s41
      %s52 = ssub.s32 %s30, %s49
      %s53 = ssub.s32 %s50, %s51
      %s54 = sor.u32 %s52, %s53
      %p55 = scmp.eq.s32.totalorder %s54, 0
      %s57 = sadd.s32 %s56, 1
      %s58 = scalar_select %p55, %s56, %s57
      %p61 = pneg %p55
      %p62 = scmp.eq.s32.totalorder %s23, 1
      %p63 = por %p61, %p62
      %p64 = scmp.ne.s32.totalorder %s56, %s59
      %p65 = scmp.eq.s32.totalorder %s23, 0
      %p66 = por %p64, %p65
      %p67 = scmp.ne.s32.totalorder %s56, %s59
      %p68 = scmp.eq.s32.totalorder %s28, 1
      %p69 = por %p67, %p68
      %p70 = scmp.ne.s32.totalorder %s59, %s60
      %p71 = scmp.eq.s32.totalorder %s28, 0
      %p72 = por %p70, %p71
      %p73 = scmp.ne.s32.totalorder %s59, %s60
      %p74 = scmp.eq.s32.totalorder %s29, 1
      %p75 = por %p73, %p74
      %p77 = scmp.ne.s32.totalorder %s60, %s76
      %p78 = scmp.eq.s32.totalorder %s29, 0
      %p79 = por %p77, %p78
      %s80 = sadd.s32 %s31, %s32
      %s81 = sadd.s32 %s45, %s41
      %s82 = ssub.s32 %s30, %s49
      %s83 = ssub.s32 %s80, %s81
      %s84 = sor.u32 %s82, %s83
      %p85 = scmp.eq.s32.totalorder %s84, 0
      %s87 = sadd.s32 %s86, 1
      %s88 = scalar_select %p85, %s86, %s87
      %p91 = pneg %p85
      %p92 = scmp.eq.s32.totalorder %s23, 1
      %p93 = por %p91, %p92
      %p94 = scmp.ne.s32.totalorder %s86, %s89
      %p95 = scmp.eq.s32.totalorder %s23, 0
      %p96 = por %p94, %p95
      %p97 = scmp.ne.s32.totalorder %s86, %s89
      %p98 = scmp.eq.s32.totalorder %s28, 1
      %p99 = por %p97, %p98
      %p100 = scmp.ne.s32.totalorder %s89, %s90
      %p101 = scmp.eq.s32.totalorder %s28, 0
      %p102 = por %p100, %p101
      %p103 = scmp.ne.s32.totalorder %s89, %s90
      %p104 = scmp.eq.s32.totalorder %s29, 1
      %p105 = por %p103, %p104
      %p107 = scmp.ne.s32.totalorder %s90, %s106
      %p108 = scmp.eq.s32.totalorder %s29, 0
      %p109 = por %p107, %p108
      %s110 = ssub.s32 %s30, %s49
      %s111 = ssub.s32 %s31, %s45
      %s112 = sor.u32 %s110, %s111
      %p113 = scmp.eq.s32.totalorder %s112, 0
      %s115 = sadd.s32 %s114, 1
      %s116 = scalar_select %p113, %s114, %s115
      %p119 = pneg %p113
      %p120 = scmp.eq.s32.totalorder %s23, 1
      %p121 = por %p119, %p120
      %p122 = scmp.ne.s32.totalorder %s114, %s117
      %p123 = scmp.eq.s32.totalorder %s23, 0
      %p124 = por %p122, %p123
      %p125 = scmp.ne.s32.totalorder %s114, %s117
      %p126 = scmp.eq.s32.totalorder %s28, 1
      %p127 = por %p125, %p126
      %p128 = scmp.ne.s32.totalorder %s117, %s118
      %p129 = scmp.eq.s32.totalorder %s28, 0
      %p130 = por %p128, %p129
      %p131 = scmp.ne.s32.totalorder %s117, %s118
      %p132 = scmp.eq.s32.totalorder %s29, 1
      %p133 = por %p131, %p132
      %p135 = scmp.ne.s32.totalorder %s118, %s134
      %p136 = scmp.eq.s32.totalorder %s29, 0
      %p137 = por %p135, %p136
      %s138 = ssub.s32 %s30, %s49
      %s139 = ssub.s32 %s31, %s45
      %s140 = sor.u32 %s138, %s139
      %p141 = scmp.eq.s32.totalorder %s140, 0
      %s143 = sadd.s32 %s142, 1
      %s144 = scalar_select %p141, %s142, %s143
      %p147 = pneg %p141
      %p148 = scmp.eq.s32.totalorder %s23, 1
      %p149 = por %p147, %p148
      %p150 = scmp.ne.s32.totalorder %s142, %s145
      %p151 = scmp.eq.s32.totalorder %s23, 0
      %p152 = por %p150, %p151
      %p153 = scmp.ne.s32.totalorder %s142, %s145
      %p154 = scmp.eq.s32.totalorder %s28, 1
      %p155 = por %p153, %p154
      %p156 = scmp.ne.s32.totalorder %s145, %s146
      %p157 = scmp.eq.s32.totalorder %s28, 0
      %p158 = por %p156, %p157
      %p159 = scmp.ne.s32.totalorder %s145, %s146
      %p160 = scmp.eq.s32.totalorder %s29, 1
      %p161 = por %p159, %p160
      %p163 = scmp.ne.s32.totalorder %s146, %s162
      %p164 = scmp.eq.s32.totalorder %s29, 0
      %p165 = por %p163, %p164
      %s166 = ssub.s32 %s30, %s49
      %s167 = ssub.s32 %s31, %s45
      %s168 = sor.u32 %s166, %s167
      %p169 = scmp.eq.s32.totalorder %s168, 0
      %s171 = sadd.s32 %s170, 1
      %s172 = scalar_select %p169, %s170, %s171
      %p175 = pneg %p169
      %p176 = scmp.eq.s32.totalorder %s23, 1
      %p177 = por %p175, %p176
      %p178 = scmp.ne.s32.totalorder %s170, %s173
      %p179 = scmp.eq.s32.totalorder %s23, 0
      %p180 = por %p178, %p179
      %p181 = scmp.ne.s32.totalorder %s170, %s173
      %p182 = scmp.eq.s32.totalorder %s28, 1
      %p183 = por %p181, %p182
      %p184 = scmp.ne.s32.totalorder %s173, %s174
      %p185 = scmp.eq.s32.totalorder %s28, 0
      %p186 = por %p184, %p185
      %p187 = scmp.ne.s32.totalorder %s173, %s174
      %p188 = scmp.eq.s32.totalorder %s29, 1
      %p189 = por %p187, %p188
      %p191 = scmp.ne.s32.totalorder %s174, %s190
      %p192 = scmp.eq.s32.totalorder %s29, 0
      %p193 = por %p191, %p192
      %p194 = scmp.le.s32.totalorder 1, %s23
      %p195 = scmp.lt.s32.totalorder %s23, 3
      %p196 = pnand %p194, %p195
      %p197 = pneg %p196
      // Predicated region
      $region9: #{tpu_custom_call.1} parent=5 // pred_check
        _
      $region10: #{tpu_custom_call.1} parent=5 // pred_check_branch
        %199 = sbr.rel (%p196) target = $region12
      $region11: #{tpu_custom_call.1} parent=5 // pred_region
        %s200 = ssub.s32 %s23, 1
      $region12: #{tpu_custom_call.1} parent=5 // pred_fallthru
        _
      %p201 = scmp.lt.s32.totalorder %s23, 2
      // Predicated region
      $region13: #{tpu_custom_call.1} parent=5 // pred_check
        %p202 = pneg %p201
      $region14: #{tpu_custom_call.1} parent=5 // pred_check_branch
        %204 = sbr.rel (%p202) target = $region16
      $region15: #{tpu_custom_call.1} parent=5 // pred_region
        // Predicated region
        $region17: #{tpu_custom_call.1} parent=15 // pred_check
          %p205 = pneg %p66
        $region18: #{tpu_custom_call.1} parent=15 // pred_check_branch
          %207 = sbr.rel (%p205) target = $region20
        $region19: #{tpu_custom_call.1} parent=15 // pred_region
          %s208 = sand.u32 %s56, 1
          %s209 = scalar_lea.sflag [#allocation3], %s208
          %s210 = sand.u32 %s56, 1
          %s211 = smul.addr %s210, 32
          %s212 = scalar_lea.vmem [#allocation2], %s211
          %s213 = sadd.s32 %s31, %s32
          %215 = vsyncadd %s209, 0
          %s216 = smul.addr %s30, 4
          %s217 = sadd.s32 %s213, %s216
          %s218 = smul.addr %s217, 8
          %s219 = scalar_lea.hbm %s0, %s218
          %s220 = sshll.u32 %s219, 4
          %s221 = int_to_ptr.hbm [resolvable:$true] %s220
          %s222 = sshll.u32 %s212, 4
          %s223 = int_to_ptr.vmem [resolvable:$true] %s222
          %228 = dma.hbm_to_vmem [thread:$0]  %s221, 512, %s223, %s209, 128, 128, 8
        $region20: #{tpu_custom_call.1} parent=15 // pred_fallthru
          _
        // Predicated region
        $region21: #{tpu_custom_call.1} parent=15 // pred_check
          %p229 = pneg %p96
        $region22: #{tpu_custom_call.1} parent=15 // pred_check_branch
          %231 = sbr.rel (%p229) target = $region24
        $region23: #{tpu_custom_call.1} parent=15 // pred_region
          %s232 = sand.u32 %s86, 1
          %s233 = scalar_lea.sflag [#allocation6], %s232
          %s234 = sand.u32 %s86, 1
          %s235 = smul.addr %s234, 8
          %s236 = scalar_lea.vmem [#allocation5], %s235
          %s237 = sadd.s32 %s31, %s32
          %239 = vsyncadd %s233, 0
          %s240 = sadd.s32 %s237, %s30
          %s241 = smul.addr %s240, 8
          %s242 = scalar_lea.hbm %s1, %s241
          %s244 = sshll.u32 %s242, 4
          %s245 = int_to_ptr.hbm [resolvable:$true] %s244
          %s246 = sshll.u32 %s236, 4
          %s247 = int_to_ptr.vmem [resolvable:$true] %s246
          %249 = dma.hbm_to_vmem [thread:$0]  %s245, 128, %s247, %s233
        $region24: #{tpu_custom_call.1} parent=15 // pred_fallthru
          _
      $region16: #{tpu_custom_call.1} parent=5 // pred_fallthru
        _
      %p250 = scmp.le.s32.totalorder 1, %s23
      %p251 = scmp.lt.s32.totalorder %s23, 3
      %p252 = pnand %p250, %p251
      %p253 = pneg %p252
      // Predicated region
      $region25: #{tpu_custom_call.1} parent=5 // pred_check
        _
      $region26: #{tpu_custom_call.1} parent=5 // pred_check_branch
        %255 = sbr.rel (%p252) target = $region28
      $region27: #{tpu_custom_call.1} parent=5 // pred_region
        %s256 = ssub.s32 %s23, 1
        %s257 = sand.u32 %s59, 1
        %s258 = scalar_lea.sflag [#allocation3], %s257
        %s259 = sand.u32 %s59, 1
        %s260 = smul.addr %s259, 32
        %s261 = scalar_lea.vmem [#allocation2], %s260
        // Predicated region
        $region29: #{tpu_custom_call.1} parent=27 // pred_check
          %p262 = pneg %p72
        $region30: #{tpu_custom_call.1} parent=27 // pred_check_branch
          %264 = sbr.rel (%p262) target = $region32
        $region31: #{tpu_custom_call.1} parent=27 // pred_region
          %266 = dma.done %s258, 512
        $region32: #{tpu_custom_call.1} parent=27 // pred_fallthru
          _
        %s267 = sand.u32 %s89, 1
        %s268 = scalar_lea.sflag [#allocation6], %s267
        %s269 = sand.u32 %s89, 1
        %s270 = smul.addr %s269, 8
        %s271 = scalar_lea.vmem [#allocation5], %s270
        // Predicated region
        $region33: #{tpu_custom_call.1} parent=27 // pred_check
          %p272 = pneg %p102
        $region34: #{tpu_custom_call.1} parent=27 // pred_check_branch
          %274 = sbr.rel (%p272) target = $region36
        $region35: #{tpu_custom_call.1} parent=27 // pred_region
          %276 = dma.done %s268, 128
        $region36: #{tpu_custom_call.1} parent=27 // pred_fallthru
          _
        %s277 = sand.u32 %s59, 1
        %s278 = scalar_lea.sflag [#allocation3], %s277
        %s279 = sand.u32 %s59, 1
        %s280 = smul.addr %s279, 32
        %s281 = scalar_lea.vmem [#allocation2], %s280
        %p282 = pneg %p72
        %p283 = pneg %p69
        %s284 = sand.u32 %s89, 1
        %s285 = scalar_lea.sflag [#allocation6], %s284
        %s286 = sand.u32 %s89, 1
        %s287 = smul.addr %s286, 8
        %s288 = scalar_lea.vmem [#allocation5], %s287
        %p289 = pneg %p102
        %p290 = pneg %p99
        %p291 = pneg %p130
        %p292 = pneg %p127
        %s293 = sand.u32 %s117, 1
        %s294 = scalar_lea.sflag [#allocation4], %s293
        %s295 = sand.u32 %s117, 1
        %s296 = smul.addr %s295, 4
        %s297 = scalar_lea.vmem [#allocation7], %s296
        %p298 = pneg %p158
        %p299 = pneg %p155
        %s300 = sand.u32 %s28, 1
        %s301 = scalar_lea.sflag [#allocation9], %s300
        %s302 = sand.u32 %s145, 1
        %s303 = smul.addr %s302, 4
        %s304 = scalar_lea.vmem [#allocation8], %s303
        %p305 = pneg %p186
        %p306 = pneg %p183
        %s307 = sand.u32 %s28, 1
        %s308 = scalar_lea.sflag [#allocation9], %s307
        %s309 = sand.u32 %s173, 1
        %s310 = smul.addr %s309, 4
        %s311 = scalar_lea.vmem [#allocation10], %s310
        %s312 = sadd.s32 %s34, %s35
        %s313 = sadd.s32 %s34, %s35
        %p314 = scmp.eq.s32.totalorder %s35, 0
        // Predicated region
        $region37: #{tpu_custom_call.1} parent=27 // pred_check
          %p315 = pneg %p314
        $region38: #{tpu_custom_call.1} parent=27 // pred_check_branch
          %317 = sbr.rel (%p315) target = $region40
        $region39: #{tpu_custom_call.1} parent=27 // pred_region
          %318 = vst [vmem:[%s297] sm:$0xf] 0.0
          %319 = vst [vmem:[%s304] sm:$0xf] 0.0
          %320 = vst [vmem:[%s311] sm:$0xf] 0.0
        $region40: #{tpu_custom_call.1} parent=27 // pred_fallthru
          _
        %v321 = vld [vmem:[%s261] sm:$0xff]
        %v322 = vld [vmem:[%s261 + $0x8] sm:$0xff]
        %v323 = vld [vmem:[%s261 + $0x10] sm:$0xff]
        %v324 = vld [vmem:[%s261 + $0x18] sm:$0xff]
        %v325 = vmax.f32 %v321, %v322
        %v326 = vmax.f32 %v323, %v324
        %v327 = vmax.f32 %v325, %v326
        %v328 = vsub.f32 %v321, %v327
        %v329 = vsub.f32 %v322, %v327
        %v330 = vsub.f32 %v323, %v327
        %v331 = vsub.f32 %v324, %v327
        %v332 = vmul.f32 %v328, 1.442695
        %v333 = vpow.pop %v332
        %v334 = vmul.f32 %v329, 1.442695
        %v335 = vpow.pop %v334
        %v336 = vmul.f32 %v330, 1.442695
        %v337 = vpow.pop %v336
        %v338 = vmul.f32 %v331, 1.442695
        %v339 = vpow.pop %v338
        %v340 = vadd.f32 %v333, %v335
        %v341 = vadd.f32 %v340, %v337
        %v342 = vadd.f32 %v341, %v339
        %v343 = vrcp.pop %v342
        %v344 = vmul.f32 %v342, %v343
        %v345 = vsub.f32 2.0, %v344
        %v346 = vmul.f32 %v343, %v345
        %v347 = vmul.f32 %v333, %v346
        %v348 = vmul.f32 %v335, %v346
        %v349 = vmul.f32 %v337, %v346
        %v350 = vmul.f32 %v339, %v346
        %v351 = vld [vmem:[%s271] sm:$0xff]
        %s352 = sadd.s32 %s34, %s35
        %s353 = sadd.s32 %s352, 1
        %s354 = smul.u32 %s353, 1024
        %p355 = scmp.gt.s32.totalorder %s354, 256
        // Predicated region
        $region41: #{tpu_custom_call.1} parent=27 // pred_check
          %p356 = pneg %p355
        $region42: #{tpu_custom_call.1} parent=27 // pred_check_branch
          %358 = sbr.rel (%p356) target = $region44
        $region43: #{tpu_custom_call.1} parent=27 // pred_region
          %s359 = smul.u32 %s352, 1024
          %v360 = vlaneseq
          %v361 = vshrl.u32 %v360, 7
          %v362 = vmul.u32 %v361, 128
          %v363 = vstv %s359
          %v364 = vadd.s32 %v363, %v362
          %v365 = vlaneseq
          %v366 = vand.u32 %v365, 127
          %v367 = vadd.s32 %v364, %v366
          %vm368 = vcmp.lt.s32.totalorder %v367, 256
          %v369 = vsel %vm368, 1, 0
          %vm370 = vcmp.eq.s32.totalorder %v369, 1
          %v371 = vsel %vm370, %v347, 0.0
          %v372 = vsel %vm370, %v348, 0.0
          %v373 = vsel %vm370, %v349, 0.0
          %v374 = vsel %vm370, %v350, 0.0
          %vm375 = vcmp.eq.s32.totalorder %v351, 0
          %v376 = vld [vmem:[%s297] sm:$0x1]
          %v377 = vsel %vm375, %v371, 0.0
          %v378 = vrot.slane %v377, 4
          %v379 = vadd.f32 %v377, %v378
          %v380 = vrot.slane %v379, 2
          %v381 = vadd.f32 %v379, %v380
          %v382 = vrot.slane %v381, 1
          %v383 = vadd.f32 %v381, %v382
          %v384 = vadd.f32 %v376, %v383
          %385 = vst [vmem:[%s297] sm:$0x1] %v384
          %v386 = vld [vmem:[%s304] sm:$0x1]
          %v387 = vmul.f32 %v371, %v371
          %v388 = vrot.slane %v387, 4
          %v389 = vadd.f32 %v387, %v388
          %v390 = vrot.slane %v389, 2
          %v391 = vadd.f32 %v389, %v390
          %v392 = vrot.slane %v391, 1
          %v393 = vadd.f32 %v391, %v392
          %v394 = vadd.f32 %v386, %v393
          %395 = vst [vmem:[%s304] sm:$0x1] %v394
          %v396 = vld [vmem:[%s311] sm:$0x1]
          %v397 = vsel %vm375, 1, 0
          %v398 = vcvt.s32.f32 %v397
          %v399 = vrot.slane %v398, 4
          %v400 = vadd.f32 %v398, %v399
          %v401 = vrot.slane %v400, 2
          %v402 = vadd.f32 %v400, %v401
          %v403 = vrot.slane %v402, 1
          %v404 = vadd.f32 %v402, %v403
          %v405 = vadd.f32 %v396, %v404
          %406 = vst [vmem:[%s311] sm:$0x1] %v405
          %vm407 = vcmp.eq.s32.totalorder %v351, 1
          %v408 = vld [vmem:[%s297 + $0x1] sm:$0x1]
          %v409 = vsel %vm407, %v372, 0.0
          %v410 = vrot.slane %v409, 4
          %v411 = vadd.f32 %v409, %v410
          %v412 = vrot.slane %v411, 2
          %v413 = vadd.f32 %v411, %v412
          %v414 = vrot.slane %v413, 1
          %v415 = vadd.f32 %v413, %v414
          %v416 = vadd.f32 %v408, %v415
          %417 = vst [vmem:[%s297 + $0x1] sm:$0x1] %v416
          %v418 = vld [vmem:[%s304 + $0x1] sm:$0x1]
          %v419 = vmul.f32 %v372, %v372
          %v420 = vrot.slane %v419, 4
          %v421 = vadd.f32 %v419, %v420
          %v422 = vrot.slane %v421, 2
          %v423 = vadd.f32 %v421, %v422
          %v424 = vrot.slane %v423, 1
          %v425 = vadd.f32 %v423, %v424
          %v426 = vadd.f32 %v418, %v425
          %427 = vst [vmem:[%s304 + $0x1] sm:$0x1] %v426
          %v428 = vld [vmem:[%s311 + $0x1] sm:$0x1]
          %v429 = vsel %vm407, 1, 0
          %v430 = vcvt.s32.f32 %v429
          %v431 = vrot.slane %v430, 4
          %v432 = vadd.f32 %v430, %v431
          %v433 = vrot.slane %v432, 2
          %v434 = vadd.f32 %v432, %v433
          %v435 = vrot.slane %v434, 1
          %v436 = vadd.f32 %v434, %v435
          %v437 = vadd.f32 %v428, %v436
          %438 = vst [vmem:[%s311 + $0x1] sm:$0x1] %v437
          %vm439 = vcmp.eq.s32.totalorder %v351, 2
          %v440 = vld [vmem:[%s297 + $0x2] sm:$0x1]
          %v441 = vsel %vm439, %v373, 0.0
          %v442 = vrot.slane %v441, 4
          %v443 = vadd.f32 %v441, %v442
          %v444 = vrot.slane %v443, 2
          %v445 = vadd.f32 %v443, %v444
          %v446 = vrot.slane %v445, 1
          %v447 = vadd.f32 %v445, %v446
          %v448 = vadd.f32 %v440, %v447
          %449 = vst [vmem:[%s297 + $0x2] sm:$0x1] %v448
          %v450 = vld [vmem:[%s304 + $0x2] sm:$0x1]
          %v451 = vmul.f32 %v373, %v373
          %v452 = vrot.slane %v451, 4
          %v453 = vadd.f32 %v451, %v452
          %v454 = vrot.slane %v453, 2
          %v455 = vadd.f32 %v453, %v454
          %v456 = vrot.slane %v455, 1
          %v457 = vadd.f32 %v455, %v456
          %v458 = vadd.f32 %v450, %v457
          %459 = vst [vmem:[%s304 + $0x2] sm:$0x1] %v458
          %v460 = vld [vmem:[%s311 + $0x2] sm:$0x1]
          %v461 = vsel %vm439, 1, 0
          %v462 = vcvt.s32.f32 %v461
          %v463 = vrot.slane %v462, 4
          %v464 = vadd.f32 %v462, %v463
          %v465 = vrot.slane %v464, 2
          %v466 = vadd.f32 %v464, %v465
          %v467 = vrot.slane %v466, 1
          %v468 = vadd.f32 %v466, %v467
          %v469 = vadd.f32 %v460, %v468
          %470 = vst [vmem:[%s311 + $0x2] sm:$0x1] %v469
          %vm471 = vcmp.eq.s32.totalorder %v351, 3
          %v472 = vld [vmem:[%s297 + $0x3] sm:$0x1]
          %v473 = vsel %vm471, %v374, 0.0
          %v474 = vrot.slane %v473, 4
          %v475 = vadd.f32 %v473, %v474
          %v476 = vrot.slane %v475, 2
          %v477 = vadd.f32 %v475, %v476
          %v478 = vrot.slane %v477, 1
          %v479 = vadd.f32 %v477, %v478
          %v480 = vadd.f32 %v472, %v479
          %481 = vst [vmem:[%s297 + $0x3] sm:$0x1] %v480
          %v482 = vld [vmem:[%s304 + $0x3] sm:$0x1]
          %v483 = vmul.f32 %v374, %v374
          %v484 = vrot.slane %v483, 4
          %v485 = vadd.f32 %v483, %v484
          %v486 = vrot.slane %v485, 2
          %v487 = vadd.f32 %v485, %v486
          %v488 = vrot.slane %v487, 1
          %v489 = vadd.f32 %v487, %v488
          %v490 = vadd.f32 %v482, %v489
          %491 = vst [vmem:[%s304 + $0x3] sm:$0x1] %v490
          %v492 = vld [vmem:[%s311 + $0x3] sm:$0x1]
          %v493 = vsel %vm471, 1, 0
          %v494 = vcvt.s32.f32 %v493
          %v495 = vrot.slane %v494, 4
          %v496 = vadd.f32 %v494, %v495
          %v497 = vrot.slane %v496, 2
          %v498 = vadd.f32 %v496, %v497
          %v499 = vrot.slane %v498, 1
          %v500 = vadd.f32 %v498, %v499
          %v501 = vadd.f32 %v492, %v500
          %502 = vst [vmem:[%s311 + $0x3] sm:$0x1] %v501
        $region44: #{tpu_custom_call.1} parent=27 // pred_fallthru
          _
        %p503 = scmp.le.s32.totalorder %s354, 256
        // Predicated region
        $region45: #{tpu_custom_call.1} parent=27 // pred_check
          %p504 = pneg %p503
        $region46: #{tpu_custom_call.1} parent=27 // pred_check_branch
          %506 = sbr.rel (%p504) target = $region48
        $region47: #{tpu_custom_call.1} parent=27 // pred_region
          %vm507 = vcmp.eq.s32.totalorder %v351, 0
          %v508 = vld [vmem:[%s297] sm:$0x1]
          %v509 = vsel %vm507, %v347, 0.0
          %v510 = vrot.slane %v509, 4
          %v511 = vadd.f32 %v509, %v510
          %v512 = vrot.slane %v511, 2
          %v513 = vadd.f32 %v511, %v512
          %v514 = vrot.slane %v513, 1
          %v515 = vadd.f32 %v513, %v514
          %v516 = vadd.f32 %v508, %v515
          %517 = vst [vmem:[%s297] sm:$0x1] %v516
          %v518 = vld [vmem:[%s304] sm:$0x1]
          %v519 = vmul.f32 %v347, %v347
          %v520 = vrot.slane %v519, 4
          %v521 = vadd.f32 %v519, %v520
          %v522 = vrot.slane %v521, 2
          %v523 = vadd.f32 %v521, %v522
          %v524 = vrot.slane %v523, 1
          %v525 = vadd.f32 %v523, %v524
          %v526 = vadd.f32 %v518, %v525
          %527 = vst [vmem:[%s304] sm:$0x1] %v526
          %v528 = vld [vmem:[%s311] sm:$0x1]
          %v529 = vsel %vm507, 1, 0
          %v530 = vcvt.s32.f32 %v529
          %v531 = vrot.slane %v530, 4
          %v532 = vadd.f32 %v530, %v531
          %v533 = vrot.slane %v532, 2
          %v534 = vadd.f32 %v532, %v533
          %v535 = vrot.slane %v534, 1
          %v536 = vadd.f32 %v534, %v535
          %v537 = vadd.f32 %v528, %v536
          %538 = vst [vmem:[%s311] sm:$0x1] %v537
          %vm539 = vcmp.eq.s32.totalorder %v351, 1
          %v540 = vld [vmem:[%s297 + $0x1] sm:$0x1]
          %v541 = vsel %vm539, %v348, 0.0
          %v542 = vrot.slane %v541, 4
          %v543 = vadd.f32 %v541, %v542
          %v544 = vrot.slane %v543, 2
          %v545 = vadd.f32 %v543, %v544
          %v546 = vrot.slane %v545, 1
          %v547 = vadd.f32 %v545, %v546
          %v548 = vadd.f32 %v540, %v547
          %549 = vst [vmem:[%s297 + $0x1] sm:$0x1] %v548
          %v550 = vld [vmem:[%s304 + $0x1] sm:$0x1]
          %v551 = vmul.f32 %v348, %v348
          %v552 = vrot.slane %v551, 4
          %v553 = vadd.f32 %v551, %v552
          %v554 = vrot.slane %v553, 2
          %v555 = vadd.f32 %v553, %v554
          %v556 = vrot.slane %v555, 1
          %v557 = vadd.f32 %v555, %v556
          %v558 = vadd.f32 %v550, %v557
          %559 = vst [vmem:[%s304 + $0x1] sm:$0x1] %v558
          %v560 = vld [vmem:[%s311 + $0x1] sm:$0x1]
          %v561 = vsel %vm539, 1, 0
          %v562 = vcvt.s32.f32 %v561
          %v563 = vrot.slane %v562, 4
          %v564 = vadd.f32 %v562, %v563
          %v565 = vrot.slane %v564, 2
          %v566 = vadd.f32 %v564, %v565
          %v567 = vrot.slane %v566, 1
          %v568 = vadd.f32 %v566, %v567
          %v569 = vadd.f32 %v560, %v568
          %570 = vst [vmem:[%s311 + $0x1] sm:$0x1] %v569
          %vm571 = vcmp.eq.s32.totalorder %v351, 2
          %v572 = vld [vmem:[%s297 + $0x2] sm:$0x1]
          %v573 = vsel %vm571, %v349, 0.0
          %v574 = vrot.slane %v573, 4
          %v575 = vadd.f32 %v573, %v574
          %v576 = vrot.slane %v575, 2
          %v577 = vadd.f32 %v575, %v576
          %v578 = vrot.slane %v577, 1
          %v579 = vadd.f32 %v577, %v578
          %v580 = vadd.f32 %v572, %v579
          %581 = vst [vmem:[%s297 + $0x2] sm:$0x1] %v580
          %v582 = vld [vmem:[%s304 + $0x2] sm:$0x1]
          %v583 = vmul.f32 %v349, %v349
          %v584 = vrot.slane %v583, 4
          %v585 = vadd.f32 %v583, %v584
          %v586 = vrot.slane %v585, 2
          %v587 = vadd.f32 %v585, %v586
          %v588 = vrot.slane %v587, 1
          %v589 = vadd.f32 %v587, %v588
          %v590 = vadd.f32 %v582, %v589
          %591 = vst [vmem:[%s304 + $0x2] sm:$0x1] %v590
          %v592 = vld [vmem:[%s311 + $0x2] sm:$0x1]
          %v593 = vsel %vm571, 1, 0
          %v594 = vcvt.s32.f32 %v593
          %v595 = vrot.slane %v594, 4
          %v596 = vadd.f32 %v594, %v595
          %v597 = vrot.slane %v596, 2
          %v598 = vadd.f32 %v596, %v597
          %v599 = vrot.slane %v598, 1
          %v600 = vadd.f32 %v598, %v599
          %v601 = vadd.f32 %v592, %v600
          %602 = vst [vmem:[%s311 + $0x2] sm:$0x1] %v601
          %vm603 = vcmp.eq.s32.totalorder %v351, 3
          %v604 = vld [vmem:[%s297 + $0x3] sm:$0x1]
          %v605 = vsel %vm603, %v350, 0.0
          %v606 = vrot.slane %v605, 4
          %v607 = vadd.f32 %v605, %v606
          %v608 = vrot.slane %v607, 2
          %v609 = vadd.f32 %v607, %v608
          %v610 = vrot.slane %v609, 1
          %v611 = vadd.f32 %v609, %v610
          %v612 = vadd.f32 %v604, %v611
          %613 = vst [vmem:[%s297 + $0x3] sm:$0x1] %v612
          %v614 = vld [vmem:[%s304 + $0x3] sm:$0x1]
          %v615 = vmul.f32 %v350, %v350
          %v616 = vrot.slane %v615, 4
          %v617 = vadd.f32 %v615, %v616
          %v618 = vrot.slane %v617, 2
          %v619 = vadd.f32 %v617, %v618
          %v620 = vrot.slane %v619, 1
          %v621 = vadd.f32 %v619, %v620
          %v622 = vadd.f32 %v614, %v621
          %623 = vst [vmem:[%s304 + $0x3] sm:$0x1] %v622
          %v624 = vld [vmem:[%s311 + $0x3] sm:$0x1]
          %v625 = vsel %vm603, 1, 0
          %v626 = vcvt.s32.f32 %v625
          %v627 = vrot.slane %v626, 4
          %v628 = vadd.f32 %v626, %v627
          %v629 = vrot.slane %v628, 2
          %v630 = vadd.f32 %v628, %v629
          %v631 = vrot.slane %v630, 1
          %v632 = vadd.f32 %v630, %v631
          %v633 = vadd.f32 %v624, %v632
          %634 = vst [vmem:[%s311 + $0x3] sm:$0x1] %v633
        $region48: #{tpu_custom_call.1} parent=27 // pred_fallthru
          _
        %s635 = sand.u32 %s117, 1
        %s636 = scalar_lea.sflag [#allocation4], %s635
        %s637 = sand.u32 %s117, 1
        %s638 = smul.addr %s637, 4
        %s639 = scalar_lea.vmem [#allocation7], %s638
        %s640 = sand.u32 %s28, 1
        %s641 = scalar_lea.sflag [#allocation9], %s640
        %s642 = sand.u32 %s145, 1
        %s643 = smul.addr %s642, 4
        %s644 = scalar_lea.vmem [#allocation8], %s643
        %s645 = sand.u32 %s28, 1
        %s646 = scalar_lea.sflag [#allocation9], %s645
        %s647 = sand.u32 %s173, 1
        %s648 = smul.addr %s647, 4
        %s649 = scalar_lea.vmem [#allocation10], %s648
        // Predicated region
        $region49: #{tpu_custom_call.1} parent=27 // pred_check
          %p650 = pneg %p127
        $region50: #{tpu_custom_call.1} parent=27 // pred_check_branch
          %652 = sbr.rel (%p650) target = $region52
        $region51: #{tpu_custom_call.1} parent=27 // pred_region
          %654 = vsyncadd %s636, 0
          %s655 = sadd.s32 %s34, %s33
          %s656 = smul.addr %s655, 4
          %s657 = scalar_lea.hbm %s2, %s656
          %s659 = sshll.u32 %s639, 4
          %s660 = int_to_ptr.vmem [resolvable:$true] %s659
          %s661 = sshll.u32 %s657, 4
          %s662 = int_to_ptr.hbm [resolvable:$true] %s661
          %664 = dma.vmem_to_hbm [thread:$0]  %s660, 64, %s662, %s636
        $region52: #{tpu_custom_call.1} parent=27 // pred_fallthru
          _
        // Predicated region
        $region53: #{tpu_custom_call.1} parent=27 // pred_check
          %p665 = pneg %p155
        $region54: #{tpu_custom_call.1} parent=27 // pred_check_branch
          %667 = sbr.rel (%p665) target = $region56
        $region55: #{tpu_custom_call.1} parent=27 // pred_region
          %669 = vsyncadd %s641, 0
          %s670 = sadd.s32 %s34, %s33
          %s671 = smul.addr %s670, 4
          %s672 = scalar_lea.hbm %s3, %s671
          %s674 = sshll.u32 %s644, 4
          %s675 = int_to_ptr.vmem [resolvable:$true] %s674
          %s676 = sshll.u32 %s672, 4
          %s677 = int_to_ptr.hbm [resolvable:$true] %s676
          %679 = dma.vmem_to_hbm [thread:$0]  %s675, 64, %s677, %s641
        $region56: #{tpu_custom_call.1} parent=27 // pred_fallthru
          _
        // Predicated region
        $region57: #{tpu_custom_call.1} parent=27 // pred_check
          %p680 = pneg %p183
        $region58: #{tpu_custom_call.1} parent=27 // pred_check_branch
          %682 = sbr.rel (%p680) target = $region60
        $region59: #{tpu_custom_call.1} parent=27 // pred_region
          %684 = vsyncadd %s646, 0
          %s685 = sadd.s32 %s34, %s33
          %s686 = smul.addr %s685, 4
          %s687 = scalar_lea.hbm %s4, %s686
          %s689 = sshll.u32 %s649, 4
          %s690 = int_to_ptr.vmem [resolvable:$true] %s689
          %s691 = sshll.u32 %s687, 4
          %s692 = int_to_ptr.hbm [resolvable:$true] %s691
          %694 = dma.vmem_to_hbm [thread:$0]  %s690, 64, %s692, %s646
        $region60: #{tpu_custom_call.1} parent=27 // pred_fallthru
          _
      $region28: #{tpu_custom_call.1} parent=5 // pred_fallthru
        _
      %p695 = scmp.le.s32.totalorder 2, %s23
      // Predicated region
      $region61: #{tpu_custom_call.1} parent=5 // pred_check
        %p696 = pneg %p695
      $region62: #{tpu_custom_call.1} parent=5 // pred_check_branch
        %698 = sbr.rel (%p696) target = $region64
      $region63: #{tpu_custom_call.1} parent=5 // pred_region
        %s699 = ssub.s32 %s23, 2
        // Predicated region
        $region65: #{tpu_custom_call.1} parent=63 // pred_check
          %p700 = pneg %p133
        $region66: #{tpu_custom_call.1} parent=63 // pred_check_branch
          %702 = sbr.rel (%p700) target = $region68
        $region67: #{tpu_custom_call.1} parent=63 // pred_region
          %s703 = sand.u32 %s118, 1
          %s704 = scalar_lea.sflag [#allocation4], %s703
          %s705 = sand.u32 %s118, 1
          %s706 = smul.addr %s705, 4
          %s707 = scalar_lea.vmem [#allocation7], %s706
          %709 = dma.done %s704, 64
        $region68: #{tpu_custom_call.1} parent=63 // pred_fallthru
          _
        // Predicated region
        $region69: #{tpu_custom_call.1} parent=63 // pred_check
          %p710 = pneg %p161
        $region70: #{tpu_custom_call.1} parent=63 // pred_check_branch
          %712 = sbr.rel (%p710) target = $region72
        $region71: #{tpu_custom_call.1} parent=63 // pred_region
          %s713 = sand.u32 %s29, 1
          %s714 = scalar_lea.sflag [#allocation9], %s713
          %s715 = sand.u32 %s146, 1
          %s716 = smul.addr %s715, 4
          %s717 = scalar_lea.vmem [#allocation8], %s716
          %719 = dma.done %s714, 64
        $region72: #{tpu_custom_call.1} parent=63 // pred_fallthru
          _
        // Predicated region
        $region73: #{tpu_custom_call.1} parent=63 // pred_check
          %p720 = pneg %p189
        $region74: #{tpu_custom_call.1} parent=63 // pred_check_branch
          %722 = sbr.rel (%p720) target = $region76
        $region75: #{tpu_custom_call.1} parent=63 // pred_region
          %s723 = sand.u32 %s29, 1
          %s724 = scalar_lea.sflag [#allocation9], %s723
          %s725 = sand.u32 %s174, 1
          %s726 = smul.addr %s725, 4
          %s727 = scalar_lea.vmem [#allocation10], %s726
          %729 = dma.done %s724, 64
        $region76: #{tpu_custom_call.1} parent=63 // pred_fallthru
          _
      $region64: #{tpu_custom_call.1} parent=5 // pred_fallthru
        _
    $region6: #{tpu_custom_call.1} parent=1 // loop_footer
      %s27 = sadd.s32 1, %s23
    $region7: #{tpu_custom_call.1} parent=1 // loop_footer_branch
      %22 = sbr.rel target = $region3
    $region8: #{tpu_custom_call.1} parent=1 // loop_exit
      _
    %730 = vsyncpa [#allocation3], 1
    %s731 = scalar_lea.sflag [#allocation3], 1
    %732 = vsyncpa %s731, 1
    %733 = vsyncpa [#allocation6], 1
    %s734 = scalar_lea.sflag [#allocation6], 1
    %735 = vsyncpa %s734, 1
    %736 = vsyncpa [#allocation4], 1
    %s737 = scalar_lea.sflag [#allocation4], 1
    %738 = vsyncpa %s737, 1
    %739 = vsyncpa [#allocation9], 1
    %s740 = scalar_lea.sflag [#allocation9], 1
    %741 = vsyncpa %s740, 1

</llo_original>
